<compile_context>
chip_gen: v5e
topology: v5e:2x2
jax: 0.10.0
libtpu: 0.0.40
codegen_flags: <defaults>
</compile_context>

<pallas_src>
import jax
import jax.numpy as jnp
import numpy as np
from jax.experimental import pallas as pl
from jax.experimental.pallas import tpu as pltpu


def mlp_decoder_kernel(x_ref, posb0_ref,
                       w0t_ref, w1_ref, b1_ref,
                       w2_ref, b2_ref, w3_ref, b3_ref,
                       o_ref):
    """One (spatial-tile, batch) grid step.

    x_ref    : (C, T)    native-layout slab (channels on sublanes, spatial lane-dense)
    posb0_ref: (T, hid)  pos_tok @ W0 + b0 for these T spatial positions (f32)
    w0t_ref  : (hid, C)  W0 transposed; w1/w2: (hid, hid); w3: (hid, oc1)
    b1/b2/b3 : (1, hid) / (1, hid) / (1, oc1)  (f32)
    o_ref    : (T, oc1)  token-major output tile
    """
    cd = w0t_ref.dtype   # matmul-operand dtype (f32 or bf16); accumulation is f32

    # Layer 0 with the NCHW->token transpose folded in: W0^T @ x on the MXU in
    # the native layout, then one small in-kernel transpose (XLU, overlaps MXU).
    h_t = jnp.dot(w0t_ref[...], x_ref[...].astype(cd),
                  preferred_element_type=jnp.float32)              # (hid, T)
    h = jnp.transpose(h_t) + posb0_ref[...]                        # (T, hid); pos+b0 folded

    # Sequential: Linear0 (no ReLU), Linear1+ReLU, Linear2+ReLU, Linear3.
    h = jnp.dot(h.astype(cd), w1_ref[...],
                preferred_element_type=jnp.float32) + b1_ref[...]
    h = jnp.maximum(h, 0.0)
    h = jnp.dot(h.astype(cd), w2_ref[...],
                preferred_element_type=jnp.float32) + b2_ref[...]
    h = jnp.maximum(h, 0.0)
    out = jnp.dot(h.astype(cd), w3_ref[...],
                  preferred_element_type=jnp.float32) + b3_ref[...]
    o_ref[...] = out.astype(o_ref.dtype)


def _choose_spatial_tile(hw, batch, cap):
    """Largest spatial tile T such that:
       * T == hw, or T is a multiple of 128 that divides hw (Mosaic lane tiling),
       * T <= cap (keeps VMEM / vreg pressure sane),
       * batch * (hw // T) >= 2 (>= 2 parallel grid steps -> both v7x TCs busy).
    Falls back to the smallest legal tile if nothing satisfies all three."""
    cands = sorted({hw} | {t for t in range(128, hw, 128) if hw % t == 0},
                   reverse=True)
    for t in cands:
        if t <= cap and batch * (hw // t) >= 2:
            return t
    return cands[-1]


def mlp_decoder_forward(x, params, out_channel, *,
                        max_tile_tokens=1024, compute_dtype=jnp.float32):
    """Pallas implementation of MLP_decoder.forward.

    x: (B, C, H, W) float32, C == in_channel == num_slots.
    Returns (B, out_channel + 1, H, W) float32, matching the PyTorch module's
    raw (non-transposing) final reshape exactly.
    """
    B, C, H, W = x.shape
    HW = H * W
    hid = params["w1"].shape[0]
    oc1 = params["w3"].shape[1]              # out_channel + 1
    assert oc1 == out_channel + 1

    # PositionEmbeddingLearned tokens: pos_tok[h*W + w] = concat(col[w], row[h]).
    col = params["col_embed"]                # (W, C//2)
    row = params["row_embed"]                # (H, C//2)
    pos_tok = jnp.concatenate(
        [jnp.broadcast_to(col[None, :, :], (H, W, C // 2)),
         jnp.broadcast_to(row[:, None, :], (H, W, C // 2))],
        axis=-1).reshape(HW, C)

    # Fold pos-add and the first bias through layer 0 (tiny resident constant).
    pos_b0 = (pos_tok @ params["w0"] + params["b0"]).astype(jnp.float32)  # (HW, hid)

    # Native-layout input: (B, C, H, W) -> (B, C, HW) is a free row-major view;
    # the token transpose happens inside the kernel.
    x_nat = x.reshape(B, C, HW)

    w0t = jnp.transpose(params["w0"]).astype(compute_dtype)               # (hid, C)
    w1 = params["w1"].astype(compute_dtype)
    w2 = params["w2"].astype(compute_dtype)
    w3 = params["w3"].astype(compute_dtype)
    b1 = params["b1"].reshape(1, hid).astype(jnp.float32)
    b2 = params["b2"].reshape(1, hid).astype(jnp.float32)
    b3 = params["b3"].reshape(1, oc1).astype(jnp.float32)

    tm = _choose_spatial_tile(HW, B, max_tile_tokens)
    S = HW // tm

    def full(shape):  # whole (small) array, VMEM-resident at every grid step
        return pl.BlockSpec(shape, lambda *_: (0,) * len(shape))

    cds = jnp.dtype(compute_dtype).itemsize
    flops = 2 * B * HW * (C * hid + 2 * hid * hid + hid * oc1)
    bytes_accessed = (B * C * HW * x.dtype.itemsize           # input
                      + HW * hid * 4                          # pos @ W0 + b0 (read once)
                      + (C * hid + 2 * hid * hid + hid * oc1) * cds
                      + (2 * hid + oc1) * 4                   # biases
                      + B * HW * oc1 * 4)                     # output

    # Grid is (spatial_tile, batch): the batch axis varies fastest, so the
    # pos_b0 slab (index depends only on the spatial axis) stays resident in
    # VMEM across the whole batch and is DMA'd from HBM exactly once.
    out_tok = pl.pallas_call(
        mlp_decoder_kernel,
        out_shape=jax.ShapeDtypeStruct((B, HW, oc1), jnp.float32),
        grid=(S, B),
        in_specs=[
            pl.BlockSpec((None, C, tm), lambda s, b: (b, 0, s)),    # x slab (native NCHW)
            pl.BlockSpec((tm, hid), lambda s, b: (s, 0)),           # pos @ W0 + b0 slab
            full((hid, C)),                                         # W0^T
            full((hid, hid)), full((1, hid)),                       # W1, b1
            full((hid, hid)), full((1, hid)),                       # W2, b2
            full((hid, oc1)), full((1, oc1)),                       # W3, b3
        ],
        out_specs=pl.BlockSpec((None, tm, oc1), lambda s, b: (b, s, 0)),
        compiler_params=pltpu.CompilerParams(
            dimension_semantics=("parallel", "parallel"),
            vmem_limit_bytes=64 * 1024 * 1024),
        cost_estimate=pl.CostEstimate(flops=flops, transcendentals=0,
                                      bytes_accessed=bytes_accessed),
    )(x_nat, pos_b0, w0t, w1, b1, w2, b2, w3, b3)

    # Exactly mirrors torch: raw row-major reshape of contiguous (B, HW, oc1)
    # memory into (B, oc1, H, W) (NOT a transpose).
    return out_tok.reshape(B, oc1, H, W)


def ref_forward(x, params, out_channel):
    """Pure-JAX reference mirroring the PyTorch forward."""
    B, C, H, W = x.shape
    col = params["col_embed"]
    row = params["row_embed"]
    pos_hw = jnp.concatenate(
        [jnp.broadcast_to(col[None, :, :], (H, W, C // 2)),
         jnp.broadcast_to(row[:, None, :], (H, W, C // 2))],
        axis=-1)
    pos = jnp.transpose(pos_hw, (2, 0, 1))              # (C, H, W)
    xp = x + pos[None]
    xt = jnp.transpose(xp.reshape(B, C, H * W), (0, 2, 1))
    h = xt @ params["w0"] + params["b0"]
    h = jnp.maximum(h @ params["w1"] + params["b1"], 0.0)
    h = jnp.maximum(h @ params["w2"] + params["b2"], 0.0)
    h = h @ params["w3"] + params["b3"]
    return h.reshape(B, out_channel + 1, H, W)


def init_params(key, in_channel, resolution, hid_dim, out_channel):
    H, W = resolution
    ks = jax.random.split(key, 10)
    s = 0.02
    return {
        # PositionEmbeddingLearned: uniform [0, 1) like nn.init.uniform_
        "row_embed": jax.random.uniform(ks[0], (H, in_channel // 2), jnp.float32),
        "col_embed": jax.random.uniform(ks[1], (W, in_channel // 2), jnp.float32),
        # Linear weights stored as (in, out) for direct x @ W
        "w0": s * jax.random.normal(ks[2], (in_channel, hid_dim), jnp.float32),
        "b0": s * jax.random.normal(ks[3], (hid_dim,), jnp.float32),
        "w1": s * jax.random.normal(ks[4], (hid_dim, hid_dim), jnp.float32),
        "b1": s * jax.random.normal(ks[5], (hid_dim,), jnp.float32),
        "w2": s * jax.random.normal(ks[6], (hid_dim, hid_dim), jnp.float32),
        "b2": s * jax.random.normal(ks[7], (hid_dim,), jnp.float32),
        "w3": s * jax.random.normal(ks[8], (hid_dim, out_channel + 1), jnp.float32),
        "b3": s * jax.random.normal(ks[9], (out_channel + 1,), jnp.float32),
    }


if __name__ == "__main__":
    # Small shapes consistent with the module (its defaults are in_channel=64,
    # resolution=(32,32), hid_dim=1024, out_channel=784), scaled down but kept
    # lane-friendly: oc1 = out_channel + 1 = 128 and hid_dim = 128.
    B, in_channel, H, W = 2, 32, 16, 16
    hid_dim, out_channel = 128, 127

    key = jax.random.PRNGKey(0)
    pkey, xkey = jax.random.split(key)
    params = init_params(pkey, in_channel, (H, W), hid_dim, out_channel)
    x = jax.random.normal(xkey, (B, in_channel, H, W), jnp.float32)

    fwd = jax.jit(lambda xx, pp: mlp_decoder_forward(xx, pp, out_channel))
    out = jax.block_until_ready(fwd(x, params))

    ref = ref_forward(x, params, out_channel)
    np.testing.assert_allclose(np.asarray(out), np.asarray(ref), rtol=1e-3, atol=1e-3)
    assert out.shape == (B, out_channel + 1, H, W)
    print("KERNEL_OK")
</pallas_src>

<mosaic_0001>
module attributes {stable_mosaic.version = 11 : i64} {
  func.func @mlp_decoder_kernel(%arg0: i32, %arg1: i32, %arg2: memref<1x32x256xf32, #tpu.memory_space<vmem>>, %arg3: memref<256x128xf32, #tpu.memory_space<vmem>>, %arg4: memref<128x32xf32, #tpu.memory_space<vmem>>, %arg5: memref<128x128xf32, #tpu.memory_space<vmem>>, %arg6: memref<1x128xf32, #tpu.memory_space<vmem>>, %arg7: memref<128x128xf32, #tpu.memory_space<vmem>>, %arg8: memref<1x128xf32, #tpu.memory_space<vmem>>, %arg9: memref<128x128xf32, #tpu.memory_space<vmem>>, %arg10: memref<1x128xf32, #tpu.memory_space<vmem>>, %arg11: memref<1x256x128xf32, #tpu.memory_space<vmem>>) attributes {dimension_semantics = [#tpu.dimension_semantics<parallel>, #tpu.dimension_semantics<parallel>], iteration_bounds = array<i64: 1, 2>, scalar_prefetch = 0 : i64, scratch_operands = 0 : i64, tpu.core_type = #tpu.core_type<tc>, window_params = [{transform_indices = @transform_0, window_bounds = array<i64: 1, 32, 256>}, {transform_indices = @transform_1, window_bounds = array<i64: 256, 128>}, {pipeline_mode = #tpu.pipeline_mode<synchronous>, transform_indices = @transform_2, window_bounds = array<i64: 128, 32>}, {pipeline_mode = #tpu.pipeline_mode<synchronous>, transform_indices = @transform_3, window_bounds = array<i64: 128, 128>}, {pipeline_mode = #tpu.pipeline_mode<synchronous>, transform_indices = @transform_4, window_bounds = array<i64: 1, 128>}, {pipeline_mode = #tpu.pipeline_mode<synchronous>, transform_indices = @transform_5, window_bounds = array<i64: 128, 128>}, {pipeline_mode = #tpu.pipeline_mode<synchronous>, transform_indices = @transform_6, window_bounds = array<i64: 1, 128>}, {pipeline_mode = #tpu.pipeline_mode<synchronous>, transform_indices = @transform_7, window_bounds = array<i64: 128, 128>}, {pipeline_mode = #tpu.pipeline_mode<synchronous>, transform_indices = @transform_8, window_bounds = array<i64: 1, 128>}, {transform_indices = @transform_9, window_bounds = array<i64: 1, 256, 128>}]} {
    %c0 = arith.constant 0 : index
    %c0_0 = arith.constant 0 : index
    %0 = vector.load %arg4[%c0, %c0_0] : memref<128x32xf32, #tpu.memory_space<vmem>>, vector<128x32xf32>
    %c0_1 = arith.constant 0 : index
    %c0_2 = arith.constant 0 : index
    %c0_3 = arith.constant 0 : index
    %1 = vector.load %arg2[%c0_1, %c0_2, %c0_3] : memref<1x32x256xf32, #tpu.memory_space<vmem>>, vector<1x32x256xf32>
    %2 = vector.shape_cast %1 : vector<1x32x256xf32> to vector<32x256xf32>
    %cst = arith.constant dense<0.000000e+00> : vector<128x256xf32>
    %3 = tpu.matmul %0, %2, %cst {dimension_numbers = #tpu.dot_dimension_numbers<[1], [0], [0], [1], [0, 0, 1, 1], [], []>} : vector<128x32xf32>, vector<32x256xf32>, vector<128x256xf32> -> vector<128x256xf32>
    %4 = tpu.transpose %3, [1, 0] : vector<128x256xf32> -> vector<256x128xf32>
    %c0_4 = arith.constant 0 : index
    %c0_5 = arith.constant 0 : index
    %5 = vector.load %arg3[%c0_4, %c0_5] : memref<256x128xf32, #tpu.memory_space<vmem>>, vector<256x128xf32>
    %6 = arith.addf %4, %5 : vector<256x128xf32>
    %c0_6 = arith.constant 0 : index
    %c0_7 = arith.constant 0 : index
    %7 = vector.load %arg5[%c0_6, %c0_7] : memref<128x128xf32, #tpu.memory_space<vmem>>, vector<128x128xf32>
    %cst_8 = arith.constant dense<0.000000e+00> : vector<256x128xf32>
    %8 = tpu.matmul %6, %7, %cst_8 {dimension_numbers = #tpu.dot_dimension_numbers<[1], [0], [0], [1], [0, 0, 1, 1], [], []>} : vector<256x128xf32>, vector<128x128xf32>, vector<256x128xf32> -> vector<256x128xf32>
    %c0_9 = arith.constant 0 : index
    %c0_10 = arith.constant 0 : index
    %9 = vector.load %arg6[%c0_9, %c0_10] : memref<1x128xf32, #tpu.memory_space<vmem>>, vector<1x128xf32>
    %10 = vector.broadcast %9 : vector<1x128xf32> to vector<256x128xf32>
    %11 = arith.addf %8, %10 : vector<256x128xf32>
    %cst_11 = arith.constant 0.000000e+00 : f32
    %12 = vector.broadcast %cst_11 : f32 to vector<256x128xf32>
    %13 = arith.maximumf %11, %12 : vector<256x128xf32>
    %c0_12 = arith.constant 0 : index
    %c0_13 = arith.constant 0 : index
    %14 = vector.load %arg7[%c0_12, %c0_13] : memref<128x128xf32, #tpu.memory_space<vmem>>, vector<128x128xf32>
    %cst_14 = arith.constant dense<0.000000e+00> : vector<256x128xf32>
    %15 = tpu.matmul %13, %14, %cst_14 {dimension_numbers = #tpu.dot_dimension_numbers<[1], [0], [0], [1], [0, 0, 1, 1], [], []>} : vector<256x128xf32>, vector<128x128xf32>, vector<256x128xf32> -> vector<256x128xf32>
    %c0_15 = arith.constant 0 : index
    %c0_16 = arith.constant 0 : index
    %16 = vector.load %arg8[%c0_15, %c0_16] : memref<1x128xf32, #tpu.memory_space<vmem>>, vector<1x128xf32>
    %17 = vector.broadcast %16 : vector<1x128xf32> to vector<256x128xf32>
    %18 = arith.addf %15, %17 : vector<256x128xf32>
    %cst_17 = arith.constant 0.000000e+00 : f32
    %19 = vector.broadcast %cst_17 : f32 to vector<256x128xf32>
    %20 = arith.maximumf %18, %19 : vector<256x128xf32>
    %c0_18 = arith.constant 0 : index
    %c0_19 = arith.constant 0 : index
    %21 = vector.load %arg9[%c0_18, %c0_19] : memref<128x128xf32, #tpu.memory_space<vmem>>, vector<128x128xf32>
    %cst_20 = arith.constant dense<0.000000e+00> : vector<256x128xf32>
    %22 = tpu.matmul %20, %21, %cst_20 {dimension_numbers = #tpu.dot_dimension_numbers<[1], [0], [0], [1], [0, 0, 1, 1], [], []>} : vector<256x128xf32>, vector<128x128xf32>, vector<256x128xf32> -> vector<256x128xf32>
    %c0_21 = arith.constant 0 : index
    %c0_22 = arith.constant 0 : index
    %23 = vector.load %arg10[%c0_21, %c0_22] : memref<1x128xf32, #tpu.memory_space<vmem>>, vector<1x128xf32>
    %24 = vector.broadcast %23 : vector<1x128xf32> to vector<256x128xf32>
    %25 = arith.addf %22, %24 : vector<256x128xf32>
    %c0_23 = arith.constant 0 : index
    %c0_24 = arith.constant 0 : index
    %c0_25 = arith.constant 0 : index
    %26 = vector.load %arg11[%c0_23, %c0_24, %c0_25] : memref<1x256x128xf32, #tpu.memory_space<vmem>>, vector<1x256x128xf32>
    %27 = vector.shape_cast %26 : vector<1x256x128xf32> to vector<256x128xf32>
    %28 = vector.shape_cast %25 : vector<256x128xf32> to vector<1x256x128xf32>
    tpu.vector_store %arg11[%c0_23, %c0_24, %c0_25], %28 {strides = array<i32>} : memref<1x256x128xf32, #tpu.memory_space<vmem>>, vector<1x256x128xf32>,
    return
  }
  func.func @transform_0(%arg0: i32, %arg1: i32) -> (i32, i32, i32) {
    %c0_i32 = arith.constant 0 : i32
    %c0_i32_0 = arith.constant 0 : i32
    return %arg1, %c0_i32, %arg0 : i32, i32, i32
  }
  func.func @transform_1(%arg0: i32, %arg1: i32) -> (i32, i32) {
    %c0_i32 = arith.constant 0 : i32
    %c0_i32_0 = arith.constant 0 : i32
    return %arg0, %c0_i32 : i32, i32
  }
  func.func @transform_2(%arg0: i32, %arg1: i32) -> (i32, i32) {
    %c0_i32 = arith.constant 0 : i32
    %c0_i32_0 = arith.constant 0 : i32
    %c0_i32_1 = arith.constant 0 : i32
    return %c0_i32, %c0_i32_0 : i32, i32
  }
  func.func @transform_3(%arg0: i32, %arg1: i32) -> (i32, i32) {
    %c0_i32 = arith.constant 0 : i32
    %c0_i32_0 = arith.constant 0 : i32
    %c0_i32_1 = arith.constant 0 : i32
    return %c0_i32, %c0_i32_0 : i32, i32
  }
  func.func @transform_4(%arg0: i32, %arg1: i32) -> (i32, i32) {
    %c0_i32 = arith.constant 0 : i32
    %c0_i32_0 = arith.constant 0 : i32
    %c0_i32_1 = arith.constant 0 : i32
    return %c0_i32, %c0_i32_0 : i32, i32
  }
  func.func @transform_5(%arg0: i32, %arg1: i32) -> (i32, i32) {
    %c0_i32 = arith.constant 0 : i32
    %c0_i32_0 = arith.constant 0 : i32
    %c0_i32_1 = arith.constant 0 : i32
    return %c0_i32, %c0_i32_0 : i32, i32
  }
  func.func @transform_6(%arg0: i32, %arg1: i32) -> (i32, i32) {
    %c0_i32 = arith.constant 0 : i32
    %c0_i32_0 = arith.constant 0 : i32
    %c0_i32_1 = arith.constant 0 : i32
    return %c0_i32, %c0_i32_0 : i32, i32
  }
  func.func @transform_7(%arg0: i32, %arg1: i32) -> (i32, i32) {
    %c0_i32 = arith.constant 0 : i32
    %c0_i32_0 = arith.constant 0 : i32
    %c0_i32_1 = arith.constant 0 : i32
    return %c0_i32, %c0_i32_0 : i32, i32
  }
  func.func @transform_8(%arg0: i32, %arg1: i32) -> (i32, i32) {
    %c0_i32 = arith.constant 0 : i32
    %c0_i32_0 = arith.constant 0 : i32
    %c0_i32_1 = arith.constant 0 : i32
    return %c0_i32, %c0_i32_0 : i32, i32
  }
  func.func @transform_9(%arg0: i32, %arg1: i32) -> (i32, i32, i32) {
    %c0_i32 = arith.constant 0 : i32
    %c0_i32_0 = arith.constant 0 : i32
    return %arg1, %arg0, %c0_i32 : i32, i32, i32
  }
}

</mosaic_0001>

<llo_original>
// kernel: _lambda_.1
$region0: #{_lambda_.1}
  #allocation0 [shape = 'u32[]', space=smem, size = 0x4, offset = 0x4, fixed_abs, tag = 'smem constant byte address 0x4 - core index']
  #allocation1 [shape = 'u32[72,128]{1,0:T(1,128)}', space=vmem, size = 0x9000, scoped, tag = 'internal scratch']
  %s0 = inlined_call_operand.vmem [shape: f32[2,32,256], index: 0, kind: input, shape index: {}]
  %s1 = inlined_call_operand.vmem [shape: f32[256,128], index: 1, kind: input, shape index: {}]
  %s2 = inlined_call_operand.vmem [shape: f32[128,32], index: 2, kind: input, shape index: {}]
  %s3 = inlined_call_operand.hbm [shape: f32[128,128], index: 3, kind: input, shape index: {}]
  %s4 = inlined_call_operand.hbm [shape: f32[1,128], index: 4, kind: input, shape index: {}]
  %s5 = inlined_call_operand.hbm [shape: f32[128,128], index: 5, kind: input, shape index: {}]
  %s6 = inlined_call_operand.hbm [shape: f32[1,128], index: 6, kind: input, shape index: {}]
  %s7 = inlined_call_operand.hbm [shape: f32[128,128], index: 7, kind: input, shape index: {}]
  %s8 = inlined_call_operand.hbm [shape: f32[1,128], index: 8, kind: input, shape index: {}]
  %s9 = inlined_call_operand.vmem [shape: f32[2,256,128], index: 9, kind: output, shape index: {}]
  %s10 = sld [smem:[#allocation0]]
  $region93: #{_lambda_.1} parent=0
    _
  %s12 = ssub.s32 1, %s10
  %s13 = scalar_select 0, %s12, %s10
  $region1: #{_lambda_.1} parent=0
    #allocation2 [shape = 'u8[65536]{0}', space=vmem, size = 0x10000, scoped, tag = 'input window, operand 3, single buffered']
    #allocation3 [shape = 's32[2]{0}', space=sflag, size = 0x8, scoped, tag = 'scoped memory for _lambda_.1']
    #allocation4 [shape = 'u8[512]{0}', space=vmem, size = 0x400, scoped, tag = 'input window, operand 4, single buffered']
    #allocation5 [shape = 's32[1]{0}', space=sflag, size = 0x4, scoped, tag = 'scoped memory for _lambda_.1']
    #allocation6 [shape = 'u8[65536]{0}', space=vmem, size = 0x10000, scoped, tag = 'input window, operand 5, single buffered']
    #allocation7 [shape = 'u8[512]{0}', space=vmem, size = 0x400, scoped, tag = 'input window, operand 6, single buffered']
    #allocation8 [shape = 's32[1]{0}', space=sflag, size = 0x4, scoped, tag = 'scoped memory for _lambda_.1']
    #allocation9 [shape = 'u8[65536]{0}', space=vmem, size = 0x10000, scoped, tag = 'input window, operand 7, single buffered']
    #allocation10 [shape = 'u8[512]{0}', space=vmem, size = 0x400, scoped, tag = 'input window, operand 8, single buffered']
    #allocation11 [shape = 's32[1]{0}', space=sflag, size = 0x4, scoped, tag = 'scoped memory for _lambda_.1']
    %14 = vsyncpa [#allocation3], 0
    %15 = vsyncpa [#allocation5], 0
    %16 = vsyncpa [#allocation8], 0
    %17 = vsyncpa [#allocation11], 0
    loop: start=0, step=1, limit=4
    $region2: #{_lambda_.1} parent=1 // loop_pre_header
      _
    $region3: #{_lambda_.1} parent=1 // loop_header
      %s19 = sphi 0, %s23
      %p20 = scmp.ge.s32.totalorder %s19, 4
      %s26 = sphi 0, %s38
      %s27 = sphi 0, %s34
      %s28 = sphi 0, %s26
      %s29 = sphi 0, %s27
      %s30 = sphi 0, %s28
      %s31 = sphi 0, %s29
      %s43 = sphi 0, %s45
      %s46 = sphi 0, %s43
      %s47 = sphi 0, %s46
      %s63 = sphi 0, %s47
      %s69 = sphi 0, %s71
      %s72 = sphi 0, %s69
      %s73 = sphi 0, %s72
      %s89 = sphi 0, %s73
      %s93 = sphi 0, %s93
      %s95 = sphi 0, %s93
      %s96 = sphi 0, %s95
      %s110 = sphi 0, %s96
      %s114 = sphi 0, %s114
      %s116 = sphi 0, %s114
      %s117 = sphi 0, %s116
      %s131 = sphi 0, %s117
      %s135 = sphi 0, %s135
      %s137 = sphi 0, %s135
      %s138 = sphi 0, %s137
      %s152 = sphi 0, %s138
      %s156 = sphi 0, %s156
      %s158 = sphi 0, %s156
      %s159 = sphi 0, %s158
      %s173 = sphi 0, %s159
      %s177 = sphi 0, %s177
      %s179 = sphi 0, %s177
      %s180 = sphi 0, %s179
      %s194 = sphi 0, %s180
      %s198 = sphi 0, %s198
      %s200 = sphi 0, %s198
      %s201 = sphi 0, %s200
      %s215 = sphi 0, %s201
      %s219 = sphi 0, %s219
      %s221 = sphi 0, %s219
      %s222 = sphi 0, %s221
      %s236 = sphi 0, %s222
      %s244 = sphi 0, %s246
      %s247 = sphi 0, %s244
      %s248 = sphi 0, %s247
      %s264 = sphi 0, %s248
    $region4: #{_lambda_.1} parent=1 // loop_header_branch
      %22 = sbr.rel (%p20) target = $region8
    $region5: #{_lambda_.1} parent=1 // loop_body
      %s24 = ssub.s32 %s19, 1
      %s25 = ssub.s32 %s19, 2
      %s32 = sadd.s32 1, %s27
      %p33 = scmp.ge.s32.totalorder %s32, 2
      %s34 = scalar_select %p33, 0, %s32
      %s35 = sadd.s32 1, %s26
      %s36 = scalar_select %p33, %s35, %s26
      %p37 = scmp.ge.s32.totalorder %s36, 1
      %s38 = scalar_select %p37, 0, %s36
      %s39 = ssub.s32 %s27, %s34
      %s40 = ssub.s32 %s26, %s38
      %s41 = sor.u32 %s39, %s40
      %p42 = scmp.eq.s32.totalorder %s41, 0
      %s44 = sadd.s32 %s43, 1
      %s45 = scalar_select %p42, %s43, %s44
      %p48 = pneg %p42
      %p49 = scmp.eq.s32.totalorder %s19, 1
      %p50 = por %p48, %p49
      %p51 = scmp.ne.s32.totalorder %s43, %s46
      %p52 = scmp.eq.s32.totalorder %s19, 0
      %p53 = por %p51, %p52
      %p54 = scmp.ne.s32.totalorder %s43, %s46
      %p55 = scmp.eq.s32.totalorder %s24, 1
      %p56 = por %p54, %p55
      %p57 = scmp.ne.s32.totalorder %s46, %s47
      %p58 = scmp.eq.s32.totalorder %s24, 0
      %p59 = por %p57, %p58
      %p60 = scmp.ne.s32.totalorder %s46, %s47
      %p61 = scmp.eq.s32.totalorder %s25, 1
      %p62 = por %p60, %p61
      %p64 = scmp.ne.s32.totalorder %s47, %s63
      %p65 = scmp.eq.s32.totalorder %s25, 0
      %p66 = por %p64, %p65
      %s67 = ssub.s32 %s26, %s38
      %p68 = scmp.eq.s32.totalorder %s67, 0
      %s70 = sadd.s32 %s69, 1
      %s71 = scalar_select %p68, %s69, %s70
      %p74 = pneg %p68
      %p75 = scmp.eq.s32.totalorder %s19, 1
      %p76 = por %p74, %p75
      %p77 = scmp.ne.s32.totalorder %s69, %s72
      %p78 = scmp.eq.s32.totalorder %s19, 0
      %p79 = por %p77, %p78
      %p80 = scmp.ne.s32.totalorder %s69, %s72
      %p81 = scmp.eq.s32.totalorder %s24, 1
      %p82 = por %p80, %p81
      %p83 = scmp.ne.s32.totalorder %s72, %s73
      %p84 = scmp.eq.s32.totalorder %s24, 0
      %p85 = por %p83, %p84
      %p86 = scmp.ne.s32.totalorder %s72, %s73
      %p87 = scmp.eq.s32.totalorder %s25, 1
      %p88 = por %p86, %p87
      %p90 = scmp.ne.s32.totalorder %s73, %s89
      %p91 = scmp.eq.s32.totalorder %s25, 0
      %p92 = por %p90, %p91
      %s94 = sadd.s32 %s93, 1
      %p97 = scmp.eq.s32.totalorder %s19, 1
      %p98 = scmp.ne.s32.totalorder %s93, %s95
      %p99 = scmp.eq.s32.totalorder %s19, 0
      %p100 = por %p98, %p99
      %p101 = scmp.ne.s32.totalorder %s93, %s95
      %p102 = scmp.eq.s32.totalorder %s24, 1
      %p103 = por %p101, %p102
      %p104 = scmp.ne.s32.totalorder %s95, %s96
      %p105 = scmp.eq.s32.totalorder %s24, 0
      %p106 = por %p104, %p105
      %p107 = scmp.ne.s32.totalorder %s95, %s96
      %p108 = scmp.eq.s32.totalorder %s25, 1
      %p109 = por %p107, %p108
      %p111 = scmp.ne.s32.totalorder %s96, %s110
      %p112 = scmp.eq.s32.totalorder %s25, 0
      %p113 = por %p111, %p112
      %s115 = sadd.s32 %s114, 1
      %p118 = scmp.eq.s32.totalorder %s19, 1
      %p119 = scmp.ne.s32.totalorder %s114, %s116
      %p120 = scmp.eq.s32.totalorder %s19, 0
      %p121 = por %p119, %p120
      %p122 = scmp.ne.s32.totalorder %s114, %s116
      %p123 = scmp.eq.s32.totalorder %s24, 1
      %p124 = por %p122, %p123
      %p125 = scmp.ne.s32.totalorder %s116, %s117
      %p126 = scmp.eq.s32.totalorder %s24, 0
      %p127 = por %p125, %p126
      %p128 = scmp.ne.s32.totalorder %s116, %s117
      %p129 = scmp.eq.s32.totalorder %s25, 1
      %p130 = por %p128, %p129
      %p132 = scmp.ne.s32.totalorder %s117, %s131
      %p133 = scmp.eq.s32.totalorder %s25, 0
      %p134 = por %p132, %p133
      %s136 = sadd.s32 %s135, 1
      %p139 = scmp.eq.s32.totalorder %s19, 1
      %p140 = scmp.ne.s32.totalorder %s135, %s137
      %p141 = scmp.eq.s32.totalorder %s19, 0
      %p142 = por %p140, %p141
      %p143 = scmp.ne.s32.totalorder %s135, %s137
      %p144 = scmp.eq.s32.totalorder %s24, 1
      %p145 = por %p143, %p144
      %p146 = scmp.ne.s32.totalorder %s137, %s138
      %p147 = scmp.eq.s32.totalorder %s24, 0
      %p148 = por %p146, %p147
      %p149 = scmp.ne.s32.totalorder %s137, %s138
      %p150 = scmp.eq.s32.totalorder %s25, 1
      %p151 = por %p149, %p150
      %p153 = scmp.ne.s32.totalorder %s138, %s152
      %p154 = scmp.eq.s32.totalorder %s25, 0
      %p155 = por %p153, %p154
      %s157 = sadd.s32 %s156, 1
      %p160 = scmp.eq.s32.totalorder %s19, 1
      %p161 = scmp.ne.s32.totalorder %s156, %s158
      %p162 = scmp.eq.s32.totalorder %s19, 0
      %p163 = por %p161, %p162
      %p164 = scmp.ne.s32.totalorder %s156, %s158
      %p165 = scmp.eq.s32.totalorder %s24, 1
      %p166 = por %p164, %p165
      %p167 = scmp.ne.s32.totalorder %s158, %s159
      %p168 = scmp.eq.s32.totalorder %s24, 0
      %p169 = por %p167, %p168
      %p170 = scmp.ne.s32.totalorder %s158, %s159
      %p171 = scmp.eq.s32.totalorder %s25, 1
      %p172 = por %p170, %p171
      %p174 = scmp.ne.s32.totalorder %s159, %s173
      %p175 = scmp.eq.s32.totalorder %s25, 0
      %p176 = por %p174, %p175
      %s178 = sadd.s32 %s177, 1
      %p181 = scmp.eq.s32.totalorder %s19, 1
      %p182 = scmp.ne.s32.totalorder %s177, %s179
      %p183 = scmp.eq.s32.totalorder %s19, 0
      %p184 = por %p182, %p183
      %p185 = scmp.ne.s32.totalorder %s177, %s179
      %p186 = scmp.eq.s32.totalorder %s24, 1
      %p187 = por %p185, %p186
      %p188 = scmp.ne.s32.totalorder %s179, %s180
      %p189 = scmp.eq.s32.totalorder %s24, 0
      %p190 = por %p188, %p189
      %p191 = scmp.ne.s32.totalorder %s179, %s180
      %p192 = scmp.eq.s32.totalorder %s25, 1
      %p193 = por %p191, %p192
      %p195 = scmp.ne.s32.totalorder %s180, %s194
      %p196 = scmp.eq.s32.totalorder %s25, 0
      %p197 = por %p195, %p196
      %s199 = sadd.s32 %s198, 1
      %p202 = scmp.eq.s32.totalorder %s19, 1
      %p203 = scmp.ne.s32.totalorder %s198, %s200
      %p204 = scmp.eq.s32.totalorder %s19, 0
      %p205 = por %p203, %p204
      %p206 = scmp.ne.s32.totalorder %s198, %s200
      %p207 = scmp.eq.s32.totalorder %s24, 1
      %p208 = por %p206, %p207
      %p209 = scmp.ne.s32.totalorder %s200, %s201
      %p210 = scmp.eq.s32.totalorder %s24, 0
      %p211 = por %p209, %p210
      %p212 = scmp.ne.s32.totalorder %s200, %s201
      %p213 = scmp.eq.s32.totalorder %s25, 1
      %p214 = por %p212, %p213
      %p216 = scmp.ne.s32.totalorder %s201, %s215
      %p217 = scmp.eq.s32.totalorder %s25, 0
      %p218 = por %p216, %p217
      %s220 = sadd.s32 %s219, 1
      %p223 = scmp.eq.s32.totalorder %s19, 1
      %p224 = scmp.ne.s32.totalorder %s219, %s221
      %p225 = scmp.eq.s32.totalorder %s19, 0
      %p226 = por %p224, %p225
      %p227 = scmp.ne.s32.totalorder %s219, %s221
      %p228 = scmp.eq.s32.totalorder %s24, 1
      %p229 = por %p227, %p228
      %p230 = scmp.ne.s32.totalorder %s221, %s222
      %p231 = scmp.eq.s32.totalorder %s24, 0
      %p232 = por %p230, %p231
      %p233 = scmp.ne.s32.totalorder %s221, %s222
      %p234 = scmp.eq.s32.totalorder %s25, 1
      %p235 = por %p233, %p234
      %p237 = scmp.ne.s32.totalorder %s222, %s236
      %p238 = scmp.eq.s32.totalorder %s25, 0
      %p239 = por %p237, %p238
      %s240 = ssub.s32 %s27, %s34
      %s241 = ssub.s32 %s26, %s38
      %s242 = sor.u32 %s240, %s241
      %p243 = scmp.eq.s32.totalorder %s242, 0
      %s245 = sadd.s32 %s244, 1
      %s246 = scalar_select %p243, %s244, %s245
      %p249 = pneg %p243
      %p250 = scmp.eq.s32.totalorder %s19, 1
      %p251 = por %p249, %p250
      %p252 = scmp.ne.s32.totalorder %s244, %s247
      %p253 = scmp.eq.s32.totalorder %s19, 0
      %p254 = por %p252, %p253
      %p255 = scmp.ne.s32.totalorder %s244, %s247
      %p256 = scmp.eq.s32.totalorder %s24, 1
      %p257 = por %p255, %p256
      %p258 = scmp.ne.s32.totalorder %s247, %s248
      %p259 = scmp.eq.s32.totalorder %s24, 0
      %p260 = por %p258, %p259
      %p261 = scmp.ne.s32.totalorder %s247, %s248
      %p262 = scmp.eq.s32.totalorder %s25, 1
      %p263 = por %p261, %p262
      %p265 = scmp.ne.s32.totalorder %s248, %s264
      %p266 = scmp.eq.s32.totalorder %s25, 0
      %p267 = por %p265, %p266
      %p268 = scmp.le.s32.totalorder 1, %s19
      %p269 = scmp.lt.s32.totalorder %s19, 3
      %p270 = pnand %p268, %p269
      %p271 = pneg %p270
      // Predicated region
      $region9: #{_lambda_.1} parent=5 // pred_check
        _
      $region10: #{_lambda_.1} parent=5 // pred_check_branch
        %273 = sbr.rel (%p270) target = $region12
      $region11: #{_lambda_.1} parent=5 // pred_region
        %s274 = ssub.s32 %s19, 1
        // Predicated region
        $region13: #{_lambda_.1} parent=11 // pred_check
          %p275 = pneg %p85
        $region14: #{_lambda_.1} parent=11 // pred_check_branch
          %277 = sbr.rel (%p275) target = $region16
        $region15: #{_lambda_.1} parent=11 // pred_region
          %s278 = smul.u32 32, %s28
          %p279 = scmp.lt.s32.totalorder %s278, 31
          %s280 = scalar_select %p279, %s278, 31
          %s281 = smul.addr %s280, 8
          %s282 = scalar_lea.vmem %s1, %s281
          %s283 = smul.u32 32, %s28
        $region16: #{_lambda_.1} parent=11 // pred_fallthru
          _
        // Predicated region
        $region17: #{_lambda_.1} parent=11 // pred_check
          %p284 = pneg %p106
        $region18: #{_lambda_.1} parent=11 // pred_check_branch
          %286 = sbr.rel (%p284) target = $region20
        $region19: #{_lambda_.1} parent=11 // pred_region
          _
        $region20: #{_lambda_.1} parent=11 // pred_fallthru
          _
        // Predicated region
        $region21: #{_lambda_.1} parent=11 // pred_check
          %p287 = pneg %p127
        $region22: #{_lambda_.1} parent=11 // pred_check_branch
          %289 = sbr.rel (%p287) target = $region24
        $region23: #{_lambda_.1} parent=11 // pred_region
          %291 = vsyncadd [#allocation3], 0
          %s292 = sshll.u32 %s3, 4
          %s293 = int_to_ptr.hbm [resolvable:$true] %s292
          %s294 = sshll.u32 [#allocation2], 4
          %s295 = int_to_ptr.vmem [resolvable:$true] %s294
          %300 = dma.hbm_to_vmem [thread:$0]  %s293, 2048, %s295, [#allocation3], 128, 128, 8
        $region24: #{_lambda_.1} parent=11 // pred_fallthru
          _
        // Predicated region
        $region25: #{_lambda_.1} parent=11 // pred_check
          %p301 = pneg %p148
        $region26: #{_lambda_.1} parent=11 // pred_check_branch
          %303 = sbr.rel (%p301) target = $region28
        $region27: #{_lambda_.1} parent=11 // pred_region
          %305 = vsyncadd [#allocation5], 0
          %s307 = sshll.u32 %s4, 4
          %s308 = int_to_ptr.hbm [resolvable:$true] %s307
          %s309 = sshll.u32 [#allocation4], 4
          %s310 = int_to_ptr.vmem [resolvable:$true] %s309
          %312 = dma.hbm_to_vmem [thread:$0]  %s308, 16, %s310, [#allocation5]
        $region28: #{_lambda_.1} parent=11 // pred_fallthru
          _
        // Predicated region
        $region29: #{_lambda_.1} parent=11 // pred_check
          %p313 = pneg %p169
        $region30: #{_lambda_.1} parent=11 // pred_check_branch
          %315 = sbr.rel (%p313) target = $region32
        $region31: #{_lambda_.1} parent=11 // pred_region
          %317 = vsyncadd [#allocation5], 0
          %s318 = sshll.u32 %s5, 4
          %s319 = int_to_ptr.hbm [resolvable:$true] %s318
          %s320 = sshll.u32 [#allocation6], 4
          %s321 = int_to_ptr.vmem [resolvable:$true] %s320
          %326 = dma.hbm_to_vmem [thread:$0]  %s319, 2048, %s321, [#allocation5], 128, 128, 8
        $region32: #{_lambda_.1} parent=11 // pred_fallthru
          _
        // Predicated region
        $region33: #{_lambda_.1} parent=11 // pred_check
          %p327 = pneg %p190
        $region34: #{_lambda_.1} parent=11 // pred_check_branch
          %329 = sbr.rel (%p327) target = $region36
        $region35: #{_lambda_.1} parent=11 // pred_region
          %331 = vsyncadd [#allocation8], 0
          %s333 = sshll.u32 %s6, 4
          %s334 = int_to_ptr.hbm [resolvable:$true] %s333
          %s335 = sshll.u32 [#allocation7], 4
          %s336 = int_to_ptr.vmem [resolvable:$true] %s335
          %338 = dma.hbm_to_vmem [thread:$0]  %s334, 16, %s336, [#allocation8]
        $region36: #{_lambda_.1} parent=11 // pred_fallthru
          _
        // Predicated region
        $region37: #{_lambda_.1} parent=11 // pred_check
          %p339 = pneg %p211
        $region38: #{_lambda_.1} parent=11 // pred_check_branch
          %341 = sbr.rel (%p339) target = $region40
        $region39: #{_lambda_.1} parent=11 // pred_region
          %343 = vsyncadd [#allocation8], 0
          %s344 = sshll.u32 %s7, 4
          %s345 = int_to_ptr.hbm [resolvable:$true] %s344
          %s346 = sshll.u32 [#allocation9], 4
          %s347 = int_to_ptr.vmem [resolvable:$true] %s346
          %352 = dma.hbm_to_vmem [thread:$0]  %s345, 2048, %s347, [#allocation8], 128, 128, 8
        $region40: #{_lambda_.1} parent=11 // pred_fallthru
          _
        // Predicated region
        $region41: #{_lambda_.1} parent=11 // pred_check
          %p353 = pneg %p232
        $region42: #{_lambda_.1} parent=11 // pred_check_branch
          %355 = sbr.rel (%p353) target = $region44
        $region43: #{_lambda_.1} parent=11 // pred_region
          %357 = vsyncadd [#allocation11], 0
          %s359 = sshll.u32 %s8, 4
          %s360 = int_to_ptr.hbm [resolvable:$true] %s359
          %s361 = sshll.u32 [#allocation10], 4
          %s362 = int_to_ptr.vmem [resolvable:$true] %s361
          %364 = dma.hbm_to_vmem [thread:$0]  %s360, 16, %s362, [#allocation11]
        $region44: #{_lambda_.1} parent=11 // pred_fallthru
          _
      $region12: #{_lambda_.1} parent=5 // pred_fallthru
        _
      %p365 = scmp.lt.s32.totalorder %s19, 2
      // Predicated region
      $region45: #{_lambda_.1} parent=5 // pred_check
        %p366 = pneg %p365
      $region46: #{_lambda_.1} parent=5 // pred_check_branch
        %368 = sbr.rel (%p366) target = $region48
      $region47: #{_lambda_.1} parent=5 // pred_region
        // Predicated region
        $region49: #{_lambda_.1} parent=47 // pred_check
          %p369 = pneg %p53
        $region50: #{_lambda_.1} parent=47 // pred_check_branch
          %371 = sbr.rel (%p369) target = $region52
        $region51: #{_lambda_.1} parent=47 // pred_region
          %s372 = smul.u32 2, %s26
          %p373 = scmp.lt.s32.totalorder %s27, 1
          %s374 = scalar_select %p373, %s27, 1
          %p375 = scmp.lt.s32.totalorder %s372, 1
          %s376 = scalar_select %p375, %s372, 1
          %s377 = smul.addr %s374, 8
          %s378 = sadd.s32 %s376, %s377
          %s379 = smul.addr %s378, 8
          %s380 = scalar_lea.vmem %s0, %s379
          %s381 = smul.u32 2, %s26
        $region52: #{_lambda_.1} parent=47 // pred_fallthru
          _
      $region48: #{_lambda_.1} parent=5 // pred_fallthru
        _
      %p382 = scmp.le.s32.totalorder 1, %s19
      %p383 = scmp.lt.s32.totalorder %s19, 3
      %p384 = pnand %p382, %p383
      %p385 = pneg %p384
      // Predicated region
      $region53: #{_lambda_.1} parent=5 // pred_check
        _
      $region54: #{_lambda_.1} parent=5 // pred_check_branch
        %387 = sbr.rel (%p384) target = $region56
      $region55: #{_lambda_.1} parent=5 // pred_region
        %s388 = ssub.s32 %s19, 1
        // Predicated region
        $region57: #{_lambda_.1} parent=55 // pred_check
          %p389 = pneg %p127
        $region58: #{_lambda_.1} parent=55 // pred_check_branch
          %391 = sbr.rel (%p389) target = $region60
        $region59: #{_lambda_.1} parent=55 // pred_region
          %393 = dma.done [#allocation3], 2048
        $region60: #{_lambda_.1} parent=55 // pred_fallthru
          _
        // Predicated region
        $region61: #{_lambda_.1} parent=55 // pred_check
          %p394 = pneg %p148
        $region62: #{_lambda_.1} parent=55 // pred_check_branch
          %396 = sbr.rel (%p394) target = $region64
        $region63: #{_lambda_.1} parent=55 // pred_region
          %398 = dma.done [#allocation5], 16
        $region64: #{_lambda_.1} parent=55 // pred_fallthru
          _
        // Predicated region
        $region65: #{_lambda_.1} parent=55 // pred_check
          %p399 = pneg %p169
        $region66: #{_lambda_.1} parent=55 // pred_check_branch
          %401 = sbr.rel (%p399) target = $region68
        $region67: #{_lambda_.1} parent=55 // pred_region
          %403 = dma.done [#allocation5], 2048
        $region68: #{_lambda_.1} parent=55 // pred_fallthru
          _
        // Predicated region
        $region69: #{_lambda_.1} parent=55 // pred_check
          %p404 = pneg %p190
        $region70: #{_lambda_.1} parent=55 // pred_check_branch
          %406 = sbr.rel (%p404) target = $region72
        $region71: #{_lambda_.1} parent=55 // pred_region
          %408 = dma.done [#allocation8], 16
        $region72: #{_lambda_.1} parent=55 // pred_fallthru
          _
        // Predicated region
        $region73: #{_lambda_.1} parent=55 // pred_check
          %p409 = pneg %p211
        $region74: #{_lambda_.1} parent=55 // pred_check_branch
          %411 = sbr.rel (%p409) target = $region76
        $region75: #{_lambda_.1} parent=55 // pred_region
          %413 = dma.done [#allocation8], 2048
        $region76: #{_lambda_.1} parent=55 // pred_fallthru
          _
        // Predicated region
        $region77: #{_lambda_.1} parent=55 // pred_check
          %p414 = pneg %p232
        $region78: #{_lambda_.1} parent=55 // pred_check_branch
          %416 = sbr.rel (%p414) target = $region80
        $region79: #{_lambda_.1} parent=55 // pred_region
          %418 = dma.done [#allocation11], 16
        $region80: #{_lambda_.1} parent=55 // pred_fallthru
          _
        %s419 = smul.u32 2, %s28
        %p420 = scmp.lt.s32.totalorder %s29, 1
        %s421 = scalar_select %p420, %s29, 1
        %p422 = scmp.lt.s32.totalorder %s419, 1
        %s423 = scalar_select %p422, %s419, 1
        %s424 = smul.addr %s421, 8
        %s425 = sadd.s32 %s423, %s424
        %s426 = smul.addr %s425, 8
        %s427 = scalar_lea.vmem %s0, %s426
        %p428 = pneg %p59
        %p429 = pneg %p56
        %s430 = smul.u32 32, %s28
        %p431 = scmp.lt.s32.totalorder %s430, 31
        %s432 = scalar_select %p431, %s430, 31
        %s433 = smul.addr %s432, 8
        %s434 = scalar_lea.vmem %s1, %s433
        %p435 = pneg %p85
        %p436 = pneg %p82
        %p437 = pneg %p106
        %p438 = pneg %p103
        %p439 = pneg %p127
        %p440 = pneg %p124
        %p441 = pneg %p148
        %p442 = pneg %p145
        %p443 = pneg %p169
        %p444 = pneg %p166
        %p445 = pneg %p190
        %p446 = pneg %p187
        %p447 = pneg %p211
        %p448 = pneg %p208
        %p449 = pneg %p232
        %p450 = pneg %p229
        %p451 = pneg %p260
        %p452 = pneg %p257
        %s453 = smul.u32 32, %s28
        %p454 = scmp.lt.s32.totalorder %s29, 1
        %s455 = scalar_select %p454, %s29, 1
        %p456 = scmp.lt.s32.totalorder %s453, 31
        %s457 = scalar_select %p456, %s453, 31
        %s458 = smul.addr %s455, 32
        %s459 = sadd.s32 %s457, %s458
        %s460 = smul.addr %s459, 8
        %s461 = scalar_lea.vmem %s9, %s460
        %s462 = smul.u32 2, %s28
        %p463 = scmp.lt.s32.totalorder %s29, 1
        %s464 = scalar_select %p463, %s29, 1
        %p465 = scmp.lt.s32.totalorder %s462, 1
        %s466 = scalar_select %p465, %s462, 1
        %s467 = smul.addr %s464, 8
        %s468 = sadd.s32 %s466, %s467
        %s469 = smul.addr %s468, 8
        %s470 = scalar_lea.vmem %s0, %s469
        %s471 = smul.u32 2, %s28
        %s472 = smul.u32 32, %s28
        %p473 = scmp.lt.s32.totalorder %s472, 31
        %s474 = scalar_select %p473, %s472, 31
        %s475 = smul.addr %s474, 8
        %s476 = scalar_lea.vmem %s1, %s475
        %s477 = smul.u32 32, %s28
        %s478 = smul.u32 32, %s28
        %p479 = scmp.lt.s32.totalorder %s29, 1
        %s480 = scalar_select %p479, %s29, 1
        %p481 = scmp.lt.s32.totalorder %s478, 31
        %s482 = scalar_select %p481, %s478, 31
        %s483 = smul.addr %s480, 32
        %s484 = sadd.s32 %s482, %s483
        %s485 = smul.addr %s484, 8
        %s486 = scalar_lea.vmem %s9, %s485
        %s487 = smul.u32 32, %s28
        %v488 = vld [vmem:[%s2] sm:$0xff]
        %v489 = vld [vmem:[%s2 + $0x8] sm:$0xff]
        %v490 = vld [vmem:[%s2 + $0x10] sm:$0xff]
        %v491 = vld [vmem:[%s2 + $0x18] sm:$0xff]
        %v492 = vld [vmem:[%s2 + $0x20] sm:$0xff]
        %v493 = vld [vmem:[%s2 + $0x28] sm:$0xff]
        %v494 = vld [vmem:[%s2 + $0x30] sm:$0xff]
        %v495 = vld [vmem:[%s2 + $0x38] sm:$0xff]
        %v496 = vld [vmem:[%s2 + $0x40] sm:$0xff]
        %v497 = vld [vmem:[%s2 + $0x48] sm:$0xff]
        %v498 = vld [vmem:[%s2 + $0x50] sm:$0xff]
        %v499 = vld [vmem:[%s2 + $0x58] sm:$0xff]
        %v500 = vld [vmem:[%s2 + $0x60] sm:$0xff]
        %v501 = vld [vmem:[%s2 + $0x68] sm:$0xff]
        %v502 = vld [vmem:[%s2 + $0x70] sm:$0xff]
        %v503 = vld [vmem:[%s2 + $0x78] sm:$0xff]
        %v504 = vld [vmem:[%s470] sm:$0xff]
        %v505 = vld [vmem:[%s470 + $0x8] sm:$0xff]
        %v506 = vld [vmem:[%s470 + $0x10] sm:$0xff]
        %v507 = vld [vmem:[%s470 + $0x18] sm:$0xff]
        %v508 = vld [vmem:[%s470 + $0x20] sm:$0xff]
        %v509 = vld [vmem:[%s470 + $0x28] sm:$0xff]
        %v510 = vld [vmem:[%s470 + $0x30] sm:$0xff]
        %v511 = vld [vmem:[%s470 + $0x38] sm:$0xff]
        %vm512 = vcmask 261120
        %v514 = vsel %vm512, %v488, 0
        %v517 = vsel %vm512, %v489, 0
        %v520 = vsel %vm512, %v490, 0
        %v523 = vsel %vm512, %v491, 0
        %v526 = vsel %vm512, %v492, 0
        %v529 = vsel %vm512, %v493, 0
        %v532 = vsel %vm512, %v494, 0
        %v535 = vsel %vm512, %v495, 0
        %v538 = vsel %vm512, %v496, 0
        %v541 = vsel %vm512, %v497, 0
        %v544 = vsel %vm512, %v498, 0
        %v547 = vsel %vm512, %v499, 0
        %v550 = vsel %vm512, %v500, 0
        %v553 = vsel %vm512, %v501, 0
        %v556 = vsel %vm512, %v502, 0
        %v559 = vsel %vm512, %v503, 0
        %561 = vmatpush.msra.mxu0 0.0
        %562 = vmatpush.msra.mxu0 0.0
        %563 = vmatpush.msra.mxu0 0.0
        %564 = vmatpush.msra.mxu0 0.0
        %565 = vmatpush.msra.mxu0 0.0
        %566 = vmatpush.msra.mxu0 0.0
        %567 = vmatpush.msra.mxu0 0.0
        %568 = vmatpush.msra.mxu0 0.0
        %569 = vmatpush.msra.mxu0 0.0
        %570 = vmatpush.msra.mxu0 0.0
        %571 = vmatpush.msra.mxu0 0.0
        %572 = vmatpush.msra.mxu0 0.0
        %573 = vmatpush.msra.mxu0 %v510
        %574 = vmatpush.msra.mxu0 %v508
        %575 = vmatpush.msra.mxu0 %v506
        %576 = vmatpush.msra.mxu0 %v504
        %577 = vmatmul.f32.gmra.mxu0 %v514
        %v578 = vpop.f32.mrf.mxu0
        %v579 = vadd.f32 0.0, %v578
        %580 = vmatmul.f32.gmra.mxu0 %v517
        %v581 = vpop.f32.mrf.mxu0
        %v582 = vadd.f32 0.0, %v581
        %583 = vmatmul.f32.gmra.mxu0 %v520
        %v584 = vpop.f32.mrf.mxu0
        %v585 = vadd.f32 0.0, %v584
        %586 = vmatmul.f32.gmra.mxu0 %v523
        %v587 = vpop.f32.mrf.mxu0
        %v588 = vadd.f32 0.0, %v587
        %589 = vmatmul.f32.gmra.mxu0 %v526
        %v590 = vpop.f32.mrf.mxu0
        %v591 = vadd.f32 0.0, %v590
        %592 = vmatmul.f32.gmra.mxu0 %v529
        %v593 = vpop.f32.mrf.mxu0
        %v594 = vadd.f32 0.0, %v593
        %595 = vmatmul.f32.gmra.mxu0 %v532
        %v596 = vpop.f32.mrf.mxu0
        %v597 = vadd.f32 0.0, %v596
        %598 = vmatmul.f32.gmra.mxu0 %v535
        %v599 = vpop.f32.mrf.mxu0
        %v600 = vadd.f32 0.0, %v599
        %601 = vmatmul.f32.gmra.mxu0 %v538
        %v602 = vpop.f32.mrf.mxu0
        %v603 = vadd.f32 0.0, %v602
        %604 = vmatmul.f32.gmra.mxu0 %v541
        %v605 = vpop.f32.mrf.mxu0
        %v606 = vadd.f32 0.0, %v605
        %607 = vmatmul.f32.gmra.mxu0 %v544
        %v608 = vpop.f32.mrf.mxu0
        %v609 = vadd.f32 0.0, %v608
        %610 = vmatmul.f32.gmra.mxu0 %v547
        %v611 = vpop.f32.mrf.mxu0
        %v612 = vadd.f32 0.0, %v611
        %613 = vmatmul.f32.gmra.mxu0 %v550
        %v614 = vpop.f32.mrf.mxu0
        %v615 = vadd.f32 0.0, %v614
        %616 = vmatmul.f32.gmra.mxu0 %v553
        %v617 = vpop.f32.mrf.mxu0
        %v618 = vadd.f32 0.0, %v617
        %619 = vmatmul.f32.gmra.mxu0 %v556
        %v620 = vpop.f32.mrf.mxu0
        %v621 = vadd.f32 0.0, %v620
        %622 = vmatmul.f32.gmra.mxu0 %v559
        %v623 = vpop.f32.mrf.mxu0
        %v624 = vadd.f32 0.0, %v623
        %625 = vdwg.mxu0
        %626 = vmatpush.msra.mxu0 0.0
        %627 = vmatpush.msra.mxu0 0.0
        %628 = vmatpush.msra.mxu0 0.0
        %629 = vmatpush.msra.mxu0 0.0
        %630 = vmatpush.msra.mxu0 0.0
        %631 = vmatpush.msra.mxu0 0.0
        %632 = vmatpush.msra.mxu0 0.0
        %633 = vmatpush.msra.mxu0 0.0
        %634 = vmatpush.msra.mxu0 0.0
        %635 = vmatpush.msra.mxu0 0.0
        %636 = vmatpush.msra.mxu0 0.0
        %637 = vmatpush.msra.mxu0 0.0
        %638 = vmatpush.msra.mxu0 %v511
        %639 = vmatpush.msra.mxu0 %v509
        %640 = vmatpush.msra.mxu0 %v507
        %641 = vmatpush.msra.mxu0 %v505
        %642 = vmatmul.f32.gmra.mxu0 %v514
        %v643 = vpop.f32.mrf.mxu0
        %v644 = vadd.f32 0.0, %v643
        %645 = vmatmul.f32.gmra.mxu0 %v517
        %v646 = vpop.f32.mrf.mxu0
        %v647 = vadd.f32 0.0, %v646
        %648 = vmatmul.f32.gmra.mxu0 %v520
        %v649 = vpop.f32.mrf.mxu0
        %v650 = vadd.f32 0.0, %v649
        %651 = vmatmul.f32.gmra.mxu0 %v523
        %v652 = vpop.f32.mrf.mxu0
        %v653 = vadd.f32 0.0, %v652
        %654 = vmatmul.f32.gmra.mxu0 %v526
        %v655 = vpop.f32.mrf.mxu0
        %v656 = vadd.f32 0.0, %v655
        %657 = vmatmul.f32.gmra.mxu0 %v529
        %v658 = vpop.f32.mrf.mxu0
        %v659 = vadd.f32 0.0, %v658
        %660 = vmatmul.f32.gmra.mxu0 %v532
        %v661 = vpop.f32.mrf.mxu0
        %v662 = vadd.f32 0.0, %v661
        %663 = vmatmul.f32.gmra.mxu0 %v535
        %v664 = vpop.f32.mrf.mxu0
        %v665 = vadd.f32 0.0, %v664
        %666 = vmatmul.f32.gmra.mxu0 %v538
        %v667 = vpop.f32.mrf.mxu0
        %v668 = vadd.f32 0.0, %v667
        %669 = vmatmul.f32.gmra.mxu0 %v541
        %v670 = vpop.f32.mrf.mxu0
        %v671 = vadd.f32 0.0, %v670
        %672 = vmatmul.f32.gmra.mxu0 %v544
        %v673 = vpop.f32.mrf.mxu0
        %v674 = vadd.f32 0.0, %v673
        %675 = vmatmul.f32.gmra.mxu0 %v547
        %v676 = vpop.f32.mrf.mxu0
        %v677 = vadd.f32 0.0, %v676
        %678 = vmatmul.f32.gmra.mxu0 %v550
        %v679 = vpop.f32.mrf.mxu0
        %v680 = vadd.f32 0.0, %v679
        %681 = vmatmul.f32.gmra.mxu0 %v553
        %v682 = vpop.f32.mrf.mxu0
        %v683 = vadd.f32 0.0, %v682
        %684 = vmatmul.f32.gmra.mxu0 %v556
        %v685 = vpop.f32.mrf.mxu0
        %v686 = vadd.f32 0.0, %v685
        %687 = vmatmul.f32.gmra.mxu0 %v559
        %v688 = vpop.f32.mrf.mxu0
        %v689 = vadd.f32 0.0, %v688
        %690 = vdwg.mxu0
        %691 = vxpose.xlu0.b32.start [1/16] %v579, 128
        %692 = vxpose.xlu0.b32.cont [2/16] %v582, 128
        %693 = vxpose.xlu0.b32.cont [3/16] %v585, 128
        %694 = vxpose.xlu0.b32.cont [4/16] %v588, 128
        %695 = vxpose.xlu0.b32.cont [5/16] %v591, 128
        %696 = vxpose.xlu0.b32.cont [6/16] %v594, 128
        %697 = vxpose.xlu0.b32.cont [7/16] %v597, 128
        %698 = vxpose.xlu0.b32.cont [8/16] %v600, 128
        %699 = vxpose.xlu0.b32.cont [9/16] %v603, 128
        %700 = vxpose.xlu0.b32.cont [10/16] %v606, 128
        %701 = vxpose.xlu0.b32.cont [11/16] %v609, 128
        %702 = vxpose.xlu0.b32.cont [12/16] %v612, 128
        %703 = vxpose.xlu0.b32.cont [13/16] %v615, 128
        %704 = vxpose.xlu0.b32.cont [14/16] %v618, 128
        %705 = vxpose.xlu0.b32.cont [15/16] %v621, 128
        %706 = vxpose.xlu0.b32.end [16/16] %v624, 128
        %v707 = vpop.trf.xlu0
        %v708 = vpop.trf.xlu0
        %v709 = vpop.trf.xlu0
        %v710 = vpop.trf.xlu0
        %v711 = vpop.trf.xlu0
        %v712 = vpop.trf.xlu0
        %v713 = vpop.trf.xlu0
        %v714 = vpop.trf.xlu0
        %v715 = vpop.trf.xlu0
        %v716 = vpop.trf.xlu0
        %v717 = vpop.trf.xlu0
        %v718 = vpop.trf.xlu0
        %v719 = vpop.trf.xlu0
        %v720 = vpop.trf.xlu0
        %v721 = vpop.trf.xlu0
        %v722 = vpop.trf.xlu0
        %723 = vxpose.xlu0.b32.start [1/16] %v644, 128
        %724 = vxpose.xlu0.b32.cont [2/16] %v647, 128
        %725 = vxpose.xlu0.b32.cont [3/16] %v650, 128
        %726 = vxpose.xlu0.b32.cont [4/16] %v653, 128
        %727 = vxpose.xlu0.b32.cont [5/16] %v656, 128
        %728 = vxpose.xlu0.b32.cont [6/16] %v659, 128
        %729 = vxpose.xlu0.b32.cont [7/16] %v662, 128
        %730 = vxpose.xlu0.b32.cont [8/16] %v665, 128
        %731 = vxpose.xlu0.b32.cont [9/16] %v668, 128
        %732 = vxpose.xlu0.b32.cont [10/16] %v671, 128
        %733 = vxpose.xlu0.b32.cont [11/16] %v674, 128
        %734 = vxpose.xlu0.b32.cont [12/16] %v677, 128
        %735 = vxpose.xlu0.b32.cont [13/16] %v680, 128
        %736 = vxpose.xlu0.b32.cont [14/16] %v683, 128
        %737 = vxpose.xlu0.b32.cont [15/16] %v686, 128
        %738 = vxpose.xlu0.b32.end [16/16] %v689, 128
        %v739 = vpop.trf.xlu0
        %v740 = vpop.trf.xlu0
        %v741 = vpop.trf.xlu0
        %v742 = vpop.trf.xlu0
        %v743 = vpop.trf.xlu0
        %v744 = vpop.trf.xlu0
        %v745 = vpop.trf.xlu0
        %v746 = vpop.trf.xlu0
        %v747 = vpop.trf.xlu0
        %v748 = vpop.trf.xlu0
        %v749 = vpop.trf.xlu0
        %v750 = vpop.trf.xlu0
        %v751 = vpop.trf.xlu0
        %v752 = vpop.trf.xlu0
        %v753 = vpop.trf.xlu0
        %v754 = vpop.trf.xlu0
        %v755 = vld [vmem:[%s476] sm:$0xff]
        %v756 = vld [vmem:[%s476 + $0x8] sm:$0xff]
        %v757 = vld [vmem:[%s476 + $0x10] sm:$0xff]
        %v758 = vld [vmem:[%s476 + $0x18] sm:$0xff]
        %v759 = vld [vmem:[%s476 + $0x20] sm:$0xff]
        %v760 = vld [vmem:[%s476 + $0x28] sm:$0xff]
        %v761 = vld [vmem:[%s476 + $0x30] sm:$0xff]
        %v762 = vld [vmem:[%s476 + $0x38] sm:$0xff]
        %v763 = vld [vmem:[%s476 + $0x40] sm:$0xff]
        %v764 = vld [vmem:[%s476 + $0x48] sm:$0xff]
        %v765 = vld [vmem:[%s476 + $0x50] sm:$0xff]
        %v766 = vld [vmem:[%s476 + $0x58] sm:$0xff]
        %v767 = vld [vmem:[%s476 + $0x60] sm:$0xff]
        %v768 = vld [vmem:[%s476 + $0x68] sm:$0xff]
        %v769 = vld [vmem:[%s476 + $0x70] sm:$0xff]
        %v770 = vld [vmem:[%s476 + $0x78] sm:$0xff]
        %v771 = vld [vmem:[%s476 + $0x80] sm:$0xff]
        %v772 = vld [vmem:[%s476 + $0x88] sm:$0xff]
        %v773 = vld [vmem:[%s476 + $0x90] sm:$0xff]
        %v774 = vld [vmem:[%s476 + $0x98] sm:$0xff]
        %v775 = vld [vmem:[%s476 + $0xa0] sm:$0xff]
        %v776 = vld [vmem:[%s476 + $0xa8] sm:$0xff]
        %v777 = vld [vmem:[%s476 + $0xb0] sm:$0xff]
        %v778 = vld [vmem:[%s476 + $0xb8] sm:$0xff]
        %v779 = vld [vmem:[%s476 + $0xc0] sm:$0xff]
        %v780 = vld [vmem:[%s476 + $0xc8] sm:$0xff]
        %v781 = vld [vmem:[%s476 + $0xd0] sm:$0xff]
        %v782 = vld [vmem:[%s476 + $0xd8] sm:$0xff]
        %v783 = vld [vmem:[%s476 + $0xe0] sm:$0xff]
        %v784 = vld [vmem:[%s476 + $0xe8] sm:$0xff]
        %v785 = vld [vmem:[%s476 + $0xf0] sm:$0xff]
        %v786 = vld [vmem:[%s476 + $0xf8] sm:$0xff]
        %v787 = vadd.f32 %v707, %v755
        %v788 = vadd.f32 %v708, %v756
        %v789 = vadd.f32 %v709, %v757
        %v790 = vadd.f32 %v710, %v758
        %v791 = vadd.f32 %v711, %v759
        %v792 = vadd.f32 %v712, %v760
        %v793 = vadd.f32 %v713, %v761
        %v794 = vadd.f32 %v714, %v762
        %v795 = vadd.f32 %v715, %v763
        %v796 = vadd.f32 %v716, %v764
        %v797 = vadd.f32 %v717, %v765
        %v798 = vadd.f32 %v718, %v766
        %v799 = vadd.f32 %v719, %v767
        %v800 = vadd.f32 %v720, %v768
        %v801 = vadd.f32 %v721, %v769
        %v802 = vadd.f32 %v722, %v770
        %v803 = vadd.f32 %v739, %v771
        %v804 = vadd.f32 %v740, %v772
        %v805 = vadd.f32 %v741, %v773
        %v806 = vadd.f32 %v742, %v774
        %v807 = vadd.f32 %v743, %v775
        %v808 = vadd.f32 %v744, %v776
        %v809 = vadd.f32 %v745, %v777
        %v810 = vadd.f32 %v746, %v778
        %v811 = vadd.f32 %v747, %v779
        %v812 = vadd.f32 %v748, %v780
        %v813 = vadd.f32 %v749, %v781
        %v814 = vadd.f32 %v750, %v782
        %v815 = vadd.f32 %v751, %v783
        %v816 = vadd.f32 %v752, %v784
        %v817 = vadd.f32 %v753, %v785
        %v818 = vadd.f32 %v754, %v786
        %v819 = vld [vmem:[#allocation2] sm:$0xff]
        %v820 = vld [vmem:[#allocation2 + $0x8] sm:$0xff]
        %v821 = vld [vmem:[#allocation2 + $0x10] sm:$0xff]
        %v822 = vld [vmem:[#allocation2 + $0x18] sm:$0xff]
        %v823 = vld [vmem:[#allocation2 + $0x20] sm:$0xff]
        %v824 = vld [vmem:[#allocation2 + $0x28] sm:$0xff]
        %v825 = vld [vmem:[#allocation2 + $0x30] sm:$0xff]
        %v826 = vld [vmem:[#allocation2 + $0x38] sm:$0xff]
        %v827 = vld [vmem:[#allocation2 + $0x40] sm:$0xff]
        %v828 = vld [vmem:[#allocation2 + $0x48] sm:$0xff]
        %v829 = vld [vmem:[#allocation2 + $0x50] sm:$0xff]
        %v830 = vld [vmem:[#allocation2 + $0x58] sm:$0xff]
        %v831 = vld [vmem:[#allocation2 + $0x60] sm:$0xff]
        %v832 = vld [vmem:[#allocation2 + $0x68] sm:$0xff]
        %v833 = vld [vmem:[#allocation2 + $0x70] sm:$0xff]
        %v834 = vld [vmem:[#allocation2 + $0x78] sm:$0xff]
        %v835 = vld [vmem:[#allocation4] sm:$0x1]
        %v837 = vperm.slane %v835, 0
        %839 = vmatpush.msra.mxu0 %v834
        %840 = vmatpush.msra.mxu0 %v833
        %841 = vmatpush.msra.mxu0 %v832
        %842 = vmatpush.msra.mxu0 %v831
        %843 = vmatpush.msra.mxu0 %v830
        %844 = vmatpush.msra.mxu0 %v829
        %845 = vmatpush.msra.mxu0 %v828
        %846 = vmatpush.msra.mxu0 %v827
        %847 = vmatpush.msra.mxu0 %v826
        %848 = vmatpush.msra.mxu0 %v825
        %849 = vmatpush.msra.mxu0 %v824
        %850 = vmatpush.msra.mxu0 %v823
        %851 = vmatpush.msra.mxu0 %v822
        %852 = vmatpush.msra.mxu0 %v821
        %853 = vmatpush.msra.mxu0 %v820
        %854 = vmatpush.msra.mxu0 %v819
        %855 = vmatmul.f32.gmra.mxu0 %v787
        %v856 = vpop.f32.mrf.mxu0
        %v857 = vadd.f32 %v837, %v856
        %858 = vmatmul.f32.gmra.mxu0 %v788
        %v859 = vpop.f32.mrf.mxu0
        %v860 = vadd.f32 %v837, %v859
        %861 = vmatmul.f32.gmra.mxu0 %v789
        %v862 = vpop.f32.mrf.mxu0
        %v863 = vadd.f32 %v837, %v862
        %864 = vmatmul.f32.gmra.mxu0 %v790
        %v865 = vpop.f32.mrf.mxu0
        %v866 = vadd.f32 %v837, %v865
        %867 = vmatmul.f32.gmra.mxu0 %v791
        %v868 = vpop.f32.mrf.mxu0
        %v869 = vadd.f32 %v837, %v868
        %870 = vmatmul.f32.gmra.mxu0 %v792
        %v871 = vpop.f32.mrf.mxu0
        %v872 = vadd.f32 %v837, %v871
        %873 = vmatmul.f32.gmra.mxu0 %v793
        %v874 = vpop.f32.mrf.mxu0
        %v875 = vadd.f32 %v837, %v874
        %876 = vmatmul.f32.gmra.mxu0 %v794
        %v877 = vpop.f32.mrf.mxu0
        %v878 = vadd.f32 %v837, %v877
        %879 = vmatmul.f32.gmra.mxu0 %v795
        %v880 = vpop.f32.mrf.mxu0
        %v881 = vadd.f32 %v837, %v880
        %882 = vmatmul.f32.gmra.mxu0 %v796
        %v883 = vpop.f32.mrf.mxu0
        %v884 = vadd.f32 %v837, %v883
        %885 = vmatmul.f32.gmra.mxu0 %v797
        %v886 = vpop.f32.mrf.mxu0
        %v887 = vadd.f32 %v837, %v886
        %888 = vmatmul.f32.gmra.mxu0 %v798
        %v889 = vpop.f32.mrf.mxu0
        %v890 = vadd.f32 %v837, %v889
        %891 = vmatmul.f32.gmra.mxu0 %v799
        %v892 = vpop.f32.mrf.mxu0
        %v893 = vadd.f32 %v837, %v892
        %894 = vmatmul.f32.gmra.mxu0 %v800
        %v895 = vpop.f32.mrf.mxu0
        %v896 = vadd.f32 %v837, %v895
        %897 = vmatmul.f32.gmra.mxu0 %v801
        %v898 = vpop.f32.mrf.mxu0
        %v899 = vadd.f32 %v837, %v898
        %900 = vmatmul.f32.gmra.mxu0 %v802
        %v901 = vpop.f32.mrf.mxu0
        %v902 = vadd.f32 %v837, %v901
        %903 = vmatmul.f32.gmra.mxu0 %v803
        %v904 = vpop.f32.mrf.mxu0
        %v905 = vadd.f32 %v837, %v904
        %906 = vmatmul.f32.gmra.mxu0 %v804
        %v907 = vpop.f32.mrf.mxu0
        %v908 = vadd.f32 %v837, %v907
        %909 = vmatmul.f32.gmra.mxu0 %v805
        %v910 = vpop.f32.mrf.mxu0
        %v911 = vadd.f32 %v837, %v910
        %912 = vmatmul.f32.gmra.mxu0 %v806
        %v913 = vpop.f32.mrf.mxu0
        %v914 = vadd.f32 %v837, %v913
        %915 = vmatmul.f32.gmra.mxu0 %v807
        %v916 = vpop.f32.mrf.mxu0
        %v917 = vadd.f32 %v837, %v916
        %918 = vmatmul.f32.gmra.mxu0 %v808
        %v919 = vpop.f32.mrf.mxu0
        %v920 = vadd.f32 %v837, %v919
        %921 = vmatmul.f32.gmra.mxu0 %v809
        %v922 = vpop.f32.mrf.mxu0
        %v923 = vadd.f32 %v837, %v922
        %924 = vmatmul.f32.gmra.mxu0 %v810
        %v925 = vpop.f32.mrf.mxu0
        %v926 = vadd.f32 %v837, %v925
        %927 = vmatmul.f32.gmra.mxu0 %v811
        %v928 = vpop.f32.mrf.mxu0
        %v929 = vadd.f32 %v837, %v928
        %930 = vmatmul.f32.gmra.mxu0 %v812
        %v931 = vpop.f32.mrf.mxu0
        %v932 = vadd.f32 %v837, %v931
        %933 = vmatmul.f32.gmra.mxu0 %v813
        %v934 = vpop.f32.mrf.mxu0
        %v935 = vadd.f32 %v837, %v934
        %936 = vmatmul.f32.gmra.mxu0 %v814
        %v937 = vpop.f32.mrf.mxu0
        %v938 = vadd.f32 %v837, %v937
        %939 = vmatmul.f32.gmra.mxu0 %v815
        %v940 = vpop.f32.mrf.mxu0
        %v941 = vadd.f32 %v837, %v940
        %942 = vmatmul.f32.gmra.mxu0 %v816
        %v943 = vpop.f32.mrf.mxu0
        %v944 = vadd.f32 %v837, %v943
        %945 = vmatmul.f32.gmra.mxu0 %v817
        %v946 = vpop.f32.mrf.mxu0
        %v947 = vadd.f32 %v837, %v946
        %948 = vmatmul.f32.gmra.mxu0 %v818
        %v949 = vpop.f32.mrf.mxu0
        %v950 = vadd.f32 %v837, %v949
        %951 = vdwg.mxu0
        %v952 = vmax.f32 %v857, 0.0
        %v953 = vmax.f32 %v860, 0.0
        %v954 = vmax.f32 %v863, 0.0
        %v955 = vmax.f32 %v866, 0.0
        %v956 = vmax.f32 %v869, 0.0
        %v957 = vmax.f32 %v872, 0.0
        %v958 = vmax.f32 %v875, 0.0
        %v959 = vmax.f32 %v878, 0.0
        %v960 = vmax.f32 %v881, 0.0
        %v961 = vmax.f32 %v884, 0.0
        %v962 = vmax.f32 %v887, 0.0
        %v963 = vmax.f32 %v890, 0.0
        %v964 = vmax.f32 %v893, 0.0
        %v965 = vmax.f32 %v896, 0.0
        %v966 = vmax.f32 %v899, 0.0
        %v967 = vmax.f32 %v902, 0.0
        %v968 = vmax.f32 %v905, 0.0
        %v969 = vmax.f32 %v908, 0.0
        %v970 = vmax.f32 %v911, 0.0
        %v971 = vmax.f32 %v914, 0.0
        %v972 = vmax.f32 %v917, 0.0
        %v973 = vmax.f32 %v920, 0.0
        %v974 = vmax.f32 %v923, 0.0
        %v975 = vmax.f32 %v926, 0.0
        %v976 = vmax.f32 %v929, 0.0
        %v977 = vmax.f32 %v932, 0.0
        %v978 = vmax.f32 %v935, 0.0
        %v979 = vmax.f32 %v938, 0.0
        %v980 = vmax.f32 %v941, 0.0
        %v981 = vmax.f32 %v944, 0.0
        %v982 = vmax.f32 %v947, 0.0
        %v983 = vmax.f32 %v950, 0.0
        %v984 = vld [vmem:[#allocation6] sm:$0xff]
        %v985 = vld [vmem:[#allocation6 + $0x8] sm:$0xff]
        %v986 = vld [vmem:[#allocation6 + $0x10] sm:$0xff]
        %v987 = vld [vmem:[#allocation6 + $0x18] sm:$0xff]
        %v988 = vld [vmem:[#allocation6 + $0x20] sm:$0xff]
        %v989 = vld [vmem:[#allocation6 + $0x28] sm:$0xff]
        %v990 = vld [vmem:[#allocation6 + $0x30] sm:$0xff]
        %v991 = vld [vmem:[#allocation6 + $0x38] sm:$0xff]
        %v992 = vld [vmem:[#allocation6 + $0x40] sm:$0xff]
        %v993 = vld [vmem:[#allocation6 + $0x48] sm:$0xff]
        %v994 = vld [vmem:[#allocation6 + $0x50] sm:$0xff]
        %v995 = vld [vmem:[#allocation6 + $0x58] sm:$0xff]
        %v996 = vld [vmem:[#allocation6 + $0x60] sm:$0xff]
        %v997 = vld [vmem:[#allocation6 + $0x68] sm:$0xff]
        %v998 = vld [vmem:[#allocation6 + $0x70] sm:$0xff]
        %v999 = vld [vmem:[#allocation6 + $0x78] sm:$0xff]
        %v1000 = vld [vmem:[#allocation7] sm:$0x1]
        %v1002 = vperm.slane %v1000, 0
        %1004 = vmatpush.msra.mxu0 %v999
        %1005 = vmatpush.msra.mxu0 %v998
        %1006 = vmatpush.msra.mxu0 %v997
        %1007 = vmatpush.msra.mxu0 %v996
        %1008 = vmatpush.msra.mxu0 %v995
        %1009 = vmatpush.msra.mxu0 %v994
        %1010 = vmatpush.msra.mxu0 %v993
        %1011 = vmatpush.msra.mxu0 %v992
        %1012 = vmatpush.msra.mxu0 %v991
        %1013 = vmatpush.msra.mxu0 %v990
        %1014 = vmatpush.msra.mxu0 %v989
        %1015 = vmatpush.msra.mxu0 %v988
        %1016 = vmatpush.msra.mxu0 %v987
        %1017 = vmatpush.msra.mxu0 %v986
        %1018 = vmatpush.msra.mxu0 %v985
        %1019 = vmatpush.msra.mxu0 %v984
        %1020 = vmatmul.f32.gmra.mxu0 %v952
        %v1021 = vpop.f32.mrf.mxu0
        %v1022 = vadd.f32 %v1002, %v1021
        %1023 = vmatmul.f32.gmra.mxu0 %v953
        %v1024 = vpop.f32.mrf.mxu0
        %v1025 = vadd.f32 %v1002, %v1024
        %1026 = vmatmul.f32.gmra.mxu0 %v954
        %v1027 = vpop.f32.mrf.mxu0
        %v1028 = vadd.f32 %v1002, %v1027
        %1029 = vmatmul.f32.gmra.mxu0 %v955
        %v1030 = vpop.f32.mrf.mxu0
        %v1031 = vadd.f32 %v1002, %v1030
        %1032 = vmatmul.f32.gmra.mxu0 %v956
        %v1033 = vpop.f32.mrf.mxu0
        %v1034 = vadd.f32 %v1002, %v1033
        %1035 = vmatmul.f32.gmra.mxu0 %v957
        %v1036 = vpop.f32.mrf.mxu0
        %v1037 = vadd.f32 %v1002, %v1036
        %1038 = vmatmul.f32.gmra.mxu0 %v958
        %v1039 = vpop.f32.mrf.mxu0
        %v1040 = vadd.f32 %v1002, %v1039
        %1041 = vmatmul.f32.gmra.mxu0 %v959
        %v1042 = vpop.f32.mrf.mxu0
        %v1043 = vadd.f32 %v1002, %v1042
        %1044 = vmatmul.f32.gmra.mxu0 %v960
        %v1045 = vpop.f32.mrf.mxu0
        %v1046 = vadd.f32 %v1002, %v1045
        %1047 = vmatmul.f32.gmra.mxu0 %v961
        %v1048 = vpop.f32.mrf.mxu0
        %v1049 = vadd.f32 %v1002, %v1048
        %1050 = vmatmul.f32.gmra.mxu0 %v962
        %v1051 = vpop.f32.mrf.mxu0
        %v1052 = vadd.f32 %v1002, %v1051
        %1053 = vmatmul.f32.gmra.mxu0 %v963
        %v1054 = vpop.f32.mrf.mxu0
        %v1055 = vadd.f32 %v1002, %v1054
        %1056 = vmatmul.f32.gmra.mxu0 %v964
        %v1057 = vpop.f32.mrf.mxu0
        %v1058 = vadd.f32 %v1002, %v1057
        %1059 = vmatmul.f32.gmra.mxu0 %v965
        %v1060 = vpop.f32.mrf.mxu0
        %v1061 = vadd.f32 %v1002, %v1060
        %1062 = vmatmul.f32.gmra.mxu0 %v966
        %v1063 = vpop.f32.mrf.mxu0
        %v1064 = vadd.f32 %v1002, %v1063
        %1065 = vmatmul.f32.gmra.mxu0 %v967
        %v1066 = vpop.f32.mrf.mxu0
        %v1067 = vadd.f32 %v1002, %v1066
        %1068 = vmatmul.f32.gmra.mxu0 %v968
        %v1069 = vpop.f32.mrf.mxu0
        %v1070 = vadd.f32 %v1002, %v1069
        %1071 = vmatmul.f32.gmra.mxu0 %v969
        %v1072 = vpop.f32.mrf.mxu0
        %v1073 = vadd.f32 %v1002, %v1072
        %1074 = vmatmul.f32.gmra.mxu0 %v970
        %v1075 = vpop.f32.mrf.mxu0
        %v1076 = vadd.f32 %v1002, %v1075
        %1077 = vmatmul.f32.gmra.mxu0 %v971
        %v1078 = vpop.f32.mrf.mxu0
        %v1079 = vadd.f32 %v1002, %v1078
        %1080 = vmatmul.f32.gmra.mxu0 %v972
        %v1081 = vpop.f32.mrf.mxu0
        %v1082 = vadd.f32 %v1002, %v1081
        %1083 = vmatmul.f32.gmra.mxu0 %v973
        %v1084 = vpop.f32.mrf.mxu0
        %v1085 = vadd.f32 %v1002, %v1084
        %1086 = vmatmul.f32.gmra.mxu0 %v974
        %v1087 = vpop.f32.mrf.mxu0
        %v1088 = vadd.f32 %v1002, %v1087
        %1089 = vmatmul.f32.gmra.mxu0 %v975
        %v1090 = vpop.f32.mrf.mxu0
        %v1091 = vadd.f32 %v1002, %v1090
        %1092 = vmatmul.f32.gmra.mxu0 %v976
        %v1093 = vpop.f32.mrf.mxu0
        %v1094 = vadd.f32 %v1002, %v1093
        %1095 = vmatmul.f32.gmra.mxu0 %v977
        %v1096 = vpop.f32.mrf.mxu0
        %v1097 = vadd.f32 %v1002, %v1096
        %1098 = vmatmul.f32.gmra.mxu0 %v978
        %v1099 = vpop.f32.mrf.mxu0
        %v1100 = vadd.f32 %v1002, %v1099
        %1101 = vmatmul.f32.gmra.mxu0 %v979
        %v1102 = vpop.f32.mrf.mxu0
        %v1103 = vadd.f32 %v1002, %v1102
        %1104 = vmatmul.f32.gmra.mxu0 %v980
        %v1105 = vpop.f32.mrf.mxu0
        %v1106 = vadd.f32 %v1002, %v1105
        %1107 = vmatmul.f32.gmra.mxu0 %v981
        %v1108 = vpop.f32.mrf.mxu0
        %v1109 = vadd.f32 %v1002, %v1108
        %1110 = vmatmul.f32.gmra.mxu0 %v982
        %v1111 = vpop.f32.mrf.mxu0
        %v1112 = vadd.f32 %v1002, %v1111
        %1113 = vmatmul.f32.gmra.mxu0 %v983
        %v1114 = vpop.f32.mrf.mxu0
        %v1115 = vadd.f32 %v1002, %v1114
        %1116 = vdwg.mxu0
        %v1117 = vmax.f32 %v1022, 0.0
        %v1118 = vmax.f32 %v1025, 0.0
        %v1119 = vmax.f32 %v1028, 0.0
        %v1120 = vmax.f32 %v1031, 0.0
        %v1121 = vmax.f32 %v1034, 0.0
        %v1122 = vmax.f32 %v1037, 0.0
        %v1123 = vmax.f32 %v1040, 0.0
        %v1124 = vmax.f32 %v1043, 0.0
        %v1125 = vmax.f32 %v1046, 0.0
        %v1126 = vmax.f32 %v1049, 0.0
        %v1127 = vmax.f32 %v1052, 0.0
        %v1128 = vmax.f32 %v1055, 0.0
        %v1129 = vmax.f32 %v1058, 0.0
        %v1130 = vmax.f32 %v1061, 0.0
        %v1131 = vmax.f32 %v1064, 0.0
        %v1132 = vmax.f32 %v1067, 0.0
        %v1133 = vmax.f32 %v1070, 0.0
        %v1134 = vmax.f32 %v1073, 0.0
        %v1135 = vmax.f32 %v1076, 0.0
        %v1136 = vmax.f32 %v1079, 0.0
        %v1137 = vmax.f32 %v1082, 0.0
        %v1138 = vmax.f32 %v1085, 0.0
        %v1139 = vmax.f32 %v1088, 0.0
        %v1140 = vmax.f32 %v1091, 0.0
        %v1141 = vmax.f32 %v1094, 0.0
        %v1142 = vmax.f32 %v1097, 0.0
        %v1143 = vmax.f32 %v1100, 0.0
        %v1144 = vmax.f32 %v1103, 0.0
        %v1145 = vmax.f32 %v1106, 0.0
        %v1146 = vmax.f32 %v1109, 0.0
        %v1147 = vmax.f32 %v1112, 0.0
        %v1148 = vmax.f32 %v1115, 0.0
        %v1149 = vld [vmem:[#allocation9] sm:$0xff]
        %v1150 = vld [vmem:[#allocation9 + $0x8] sm:$0xff]
        %v1151 = vld [vmem:[#allocation9 + $0x10] sm:$0xff]
        %v1152 = vld [vmem:[#allocation9 + $0x18] sm:$0xff]
        %v1153 = vld [vmem:[#allocation9 + $0x20] sm:$0xff]
        %v1154 = vld [vmem:[#allocation9 + $0x28] sm:$0xff]
        %v1155 = vld [vmem:[#allocation9 + $0x30] sm:$0xff]
        %v1156 = vld [vmem:[#allocation9 + $0x38] sm:$0xff]
        %v1157 = vld [vmem:[#allocation9 + $0x40] sm:$0xff]
        %v1158 = vld [vmem:[#allocation9 + $0x48] sm:$0xff]
        %v1159 = vld [vmem:[#allocation9 + $0x50] sm:$0xff]
        %v1160 = vld [vmem:[#allocation9 + $0x58] sm:$0xff]
        %v1161 = vld [vmem:[#allocation9 + $0x60] sm:$0xff]
        %v1162 = vld [vmem:[#allocation9 + $0x68] sm:$0xff]
        %v1163 = vld [vmem:[#allocation9 + $0x70] sm:$0xff]
        %v1164 = vld [vmem:[#allocation9 + $0x78] sm:$0xff]
        %v1165 = vld [vmem:[#allocation10] sm:$0x1]
        %v1167 = vperm.slane %v1165, 0
        %1169 = vmatpush.msra.mxu0 %v1164
        %1170 = vmatpush.msra.mxu0 %v1163
        %1171 = vmatpush.msra.mxu0 %v1162
        %1172 = vmatpush.msra.mxu0 %v1161
        %1173 = vmatpush.msra.mxu0 %v1160
        %1174 = vmatpush.msra.mxu0 %v1159
        %1175 = vmatpush.msra.mxu0 %v1158
        %1176 = vmatpush.msra.mxu0 %v1157
        %1177 = vmatpush.msra.mxu0 %v1156
        %1178 = vmatpush.msra.mxu0 %v1155
        %1179 = vmatpush.msra.mxu0 %v1154
        %1180 = vmatpush.msra.mxu0 %v1153
        %1181 = vmatpush.msra.mxu0 %v1152
        %1182 = vmatpush.msra.mxu0 %v1151
        %1183 = vmatpush.msra.mxu0 %v1150
        %1184 = vmatpush.msra.mxu0 %v1149
        %1185 = vmatmul.f32.gmra.mxu0 %v1117
        %v1186 = vpop.f32.mrf.mxu0
        %v1187 = vadd.f32 %v1167, %v1186
        %1188 = vmatmul.f32.gmra.mxu0 %v1118
        %v1189 = vpop.f32.mrf.mxu0
        %v1190 = vadd.f32 %v1167, %v1189
        %1191 = vmatmul.f32.gmra.mxu0 %v1119
        %v1192 = vpop.f32.mrf.mxu0
        %v1193 = vadd.f32 %v1167, %v1192
        %1194 = vmatmul.f32.gmra.mxu0 %v1120
        %v1195 = vpop.f32.mrf.mxu0
        %v1196 = vadd.f32 %v1167, %v1195
        %1197 = vmatmul.f32.gmra.mxu0 %v1121
        %v1198 = vpop.f32.mrf.mxu0
        %v1199 = vadd.f32 %v1167, %v1198
        %1200 = vmatmul.f32.gmra.mxu0 %v1122
        %v1201 = vpop.f32.mrf.mxu0
        %v1202 = vadd.f32 %v1167, %v1201
        %1203 = vmatmul.f32.gmra.mxu0 %v1123
        %v1204 = vpop.f32.mrf.mxu0
        %v1205 = vadd.f32 %v1167, %v1204
        %1206 = vmatmul.f32.gmra.mxu0 %v1124
        %v1207 = vpop.f32.mrf.mxu0
        %v1208 = vadd.f32 %v1167, %v1207
        %1209 = vmatmul.f32.gmra.mxu0 %v1125
        %v1210 = vpop.f32.mrf.mxu0
        %v1211 = vadd.f32 %v1167, %v1210
        %1212 = vmatmul.f32.gmra.mxu0 %v1126
        %v1213 = vpop.f32.mrf.mxu0
        %v1214 = vadd.f32 %v1167, %v1213
        %1215 = vmatmul.f32.gmra.mxu0 %v1127
        %v1216 = vpop.f32.mrf.mxu0
        %v1217 = vadd.f32 %v1167, %v1216
        %1218 = vmatmul.f32.gmra.mxu0 %v1128
        %v1219 = vpop.f32.mrf.mxu0
        %v1220 = vadd.f32 %v1167, %v1219
        %1221 = vmatmul.f32.gmra.mxu0 %v1129
        %v1222 = vpop.f32.mrf.mxu0
        %v1223 = vadd.f32 %v1167, %v1222
        %1224 = vmatmul.f32.gmra.mxu0 %v1130
        %v1225 = vpop.f32.mrf.mxu0
        %v1226 = vadd.f32 %v1167, %v1225
        %1227 = vmatmul.f32.gmra.mxu0 %v1131
        %v1228 = vpop.f32.mrf.mxu0
        %v1229 = vadd.f32 %v1167, %v1228
        %1230 = vmatmul.f32.gmra.mxu0 %v1132
        %v1231 = vpop.f32.mrf.mxu0
        %v1232 = vadd.f32 %v1167, %v1231
        %1233 = vmatmul.f32.gmra.mxu0 %v1133
        %v1234 = vpop.f32.mrf.mxu0
        %v1235 = vadd.f32 %v1167, %v1234
        %1236 = vmatmul.f32.gmra.mxu0 %v1134
        %v1237 = vpop.f32.mrf.mxu0
        %v1238 = vadd.f32 %v1167, %v1237
        %1239 = vmatmul.f32.gmra.mxu0 %v1135
        %v1240 = vpop.f32.mrf.mxu0
        %v1241 = vadd.f32 %v1167, %v1240
        %1242 = vmatmul.f32.gmra.mxu0 %v1136
        %v1243 = vpop.f32.mrf.mxu0
        %v1244 = vadd.f32 %v1167, %v1243
        %1245 = vmatmul.f32.gmra.mxu0 %v1137
        %v1246 = vpop.f32.mrf.mxu0
        %v1247 = vadd.f32 %v1167, %v1246
        %1248 = vmatmul.f32.gmra.mxu0 %v1138
        %v1249 = vpop.f32.mrf.mxu0
        %v1250 = vadd.f32 %v1167, %v1249
        %1251 = vmatmul.f32.gmra.mxu0 %v1139
        %v1252 = vpop.f32.mrf.mxu0
        %v1253 = vadd.f32 %v1167, %v1252
        %1254 = vmatmul.f32.gmra.mxu0 %v1140
        %v1255 = vpop.f32.mrf.mxu0
        %v1256 = vadd.f32 %v1167, %v1255
        %1257 = vmatmul.f32.gmra.mxu0 %v1141
        %v1258 = vpop.f32.mrf.mxu0
        %v1259 = vadd.f32 %v1167, %v1258
        %1260 = vmatmul.f32.gmra.mxu0 %v1142
        %v1261 = vpop.f32.mrf.mxu0
        %v1262 = vadd.f32 %v1167, %v1261
        %1263 = vmatmul.f32.gmra.mxu0 %v1143
        %v1264 = vpop.f32.mrf.mxu0
        %v1265 = vadd.f32 %v1167, %v1264
        %1266 = vmatmul.f32.gmra.mxu0 %v1144
        %v1267 = vpop.f32.mrf.mxu0
        %v1268 = vadd.f32 %v1167, %v1267
        %1269 = vmatmul.f32.gmra.mxu0 %v1145
        %v1270 = vpop.f32.mrf.mxu0
        %v1271 = vadd.f32 %v1167, %v1270
        %1272 = vmatmul.f32.gmra.mxu0 %v1146
        %v1273 = vpop.f32.mrf.mxu0
        %v1274 = vadd.f32 %v1167, %v1273
        %1275 = vmatmul.f32.gmra.mxu0 %v1147
        %v1276 = vpop.f32.mrf.mxu0
        %v1277 = vadd.f32 %v1167, %v1276
        %1278 = vmatmul.f32.gmra.mxu0 %v1148
        %v1279 = vpop.f32.mrf.mxu0
        %v1280 = vadd.f32 %v1167, %v1279
        %1281 = vdwg.mxu0
        %1282 = vst [vmem:[%s486] sm:$0xff] %v1187
        %1283 = vst [vmem:[%s486 + $0x8] sm:$0xff] %v1190
        %1284 = vst [vmem:[%s486 + $0x10] sm:$0xff] %v1193
        %1285 = vst [vmem:[%s486 + $0x18] sm:$0xff] %v1196
        %1286 = vst [vmem:[%s486 + $0x20] sm:$0xff] %v1199
        %1287 = vst [vmem:[%s486 + $0x28] sm:$0xff] %v1202
        %1288 = vst [vmem:[%s486 + $0x30] sm:$0xff] %v1205
        %1289 = vst [vmem:[%s486 + $0x38] sm:$0xff] %v1208
        %1290 = vst [vmem:[%s486 + $0x40] sm:$0xff] %v1211
        %1291 = vst [vmem:[%s486 + $0x48] sm:$0xff] %v1214
        %1292 = vst [vmem:[%s486 + $0x50] sm:$0xff] %v1217
        %1293 = vst [vmem:[%s486 + $0x58] sm:$0xff] %v1220
        %1294 = vst [vmem:[%s486 + $0x60] sm:$0xff] %v1223
        %1295 = vst [vmem:[%s486 + $0x68] sm:$0xff] %v1226
        %1296 = vst [vmem:[%s486 + $0x70] sm:$0xff] %v1229
        %1297 = vst [vmem:[%s486 + $0x78] sm:$0xff] %v1232
        %1298 = vst [vmem:[%s486 + $0x80] sm:$0xff] %v1235
        %1299 = vst [vmem:[%s486 + $0x88] sm:$0xff] %v1238
        %1300 = vst [vmem:[%s486 + $0x90] sm:$0xff] %v1241
        %1301 = vst [vmem:[%s486 + $0x98] sm:$0xff] %v1244
        %1302 = vst [vmem:[%s486 + $0xa0] sm:$0xff] %v1247
        %1303 = vst [vmem:[%s486 + $0xa8] sm:$0xff] %v1250
        %1304 = vst [vmem:[%s486 + $0xb0] sm:$0xff] %v1253
        %1305 = vst [vmem:[%s486 + $0xb8] sm:$0xff] %v1256
        %1306 = vst [vmem:[%s486 + $0xc0] sm:$0xff] %v1259
        %1307 = vst [vmem:[%s486 + $0xc8] sm:$0xff] %v1262
        %1308 = vst [vmem:[%s486 + $0xd0] sm:$0xff] %v1265
        %1309 = vst [vmem:[%s486 + $0xd8] sm:$0xff] %v1268
        %1310 = vst [vmem:[%s486 + $0xe0] sm:$0xff] %v1271
        %1311 = vst [vmem:[%s486 + $0xe8] sm:$0xff] %v1274
        %1312 = vst [vmem:[%s486 + $0xf0] sm:$0xff] %v1277
        %1313 = vst [vmem:[%s486 + $0xf8] sm:$0xff] %v1280
        %s1314 = smul.u32 32, %s28
        %p1315 = scmp.lt.s32.totalorder %s29, 1
        %s1316 = scalar_select %p1315, %s29, 1
        %p1317 = scmp.lt.s32.totalorder %s1314, 31
        %s1318 = scalar_select %p1317, %s1314, 31
        %s1319 = smul.addr %s1316, 32
        %s1320 = sadd.s32 %s1318, %s1319
        %s1321 = smul.addr %s1320, 8
        %s1322 = scalar_lea.vmem %s9, %s1321
        // Predicated region
        $region81: #{_lambda_.1} parent=55 // pred_check
          %p1323 = pneg %p257
        $region82: #{_lambda_.1} parent=55 // pred_check_branch
          %1325 = sbr.rel (%p1323) target = $region84
        $region83: #{_lambda_.1} parent=55 // pred_region
          %s1326 = smul.u32 32, %s28
        $region84: #{_lambda_.1} parent=55 // pred_fallthru
          _
      $region56: #{_lambda_.1} parent=5 // pred_fallthru
        _
      %p1327 = scmp.le.s32.totalorder 2, %s19
      // Predicated region
      $region85: #{_lambda_.1} parent=5 // pred_check
        %p1328 = pneg %p1327
      $region86: #{_lambda_.1} parent=5 // pred_check_branch
        %1330 = sbr.rel (%p1328) target = $region88
      $region87: #{_lambda_.1} parent=5 // pred_region
        %s1331 = ssub.s32 %s19, 2
        // Predicated region
        $region89: #{_lambda_.1} parent=87 // pred_check
          %p1332 = pneg %p263
        $region90: #{_lambda_.1} parent=87 // pred_check_branch
          %1334 = sbr.rel (%p1332) target = $region92
        $region91: #{_lambda_.1} parent=87 // pred_region
          %s1335 = smul.u32 32, %s30
          %p1336 = scmp.lt.s32.totalorder %s31, 1
          %s1337 = scalar_select %p1336, %s31, 1
          %p1338 = scmp.lt.s32.totalorder %s1335, 31
          %s1339 = scalar_select %p1338, %s1335, 31
          %s1340 = smul.addr %s1337, 32
          %s1341 = sadd.s32 %s1339, %s1340
          %s1342 = smul.addr %s1341, 8
          %s1343 = scalar_lea.vmem %s9, %s1342
        $region92: #{_lambda_.1} parent=87 // pred_fallthru
          _
      $region88: #{_lambda_.1} parent=5 // pred_fallthru
        _
    $region6: #{_lambda_.1} parent=1 // loop_footer
      %s23 = sadd.s32 1, %s19
    $region7: #{_lambda_.1} parent=1 // loop_footer_branch
      %18 = sbr.rel target = $region3
    $region8: #{_lambda_.1} parent=1 // loop_exit
      _
    %1344 = vsyncpa [#allocation3], 1
    %s1345 = scalar_lea.sflag [#allocation3], 1
    %1346 = vsyncpa %s1345, 1
    %1347 = vsyncpa [#allocation5], 1
    %1348 = vsyncpa [#allocation8], 1
    %1349 = vsyncpa [#allocation11], 1

</llo_original>
